<compile_context>
chip_gen: v7x
topology: tpu7x:2x2x1
jax: 0.10.0
libtpu: 0.0.40
codegen_flags: <defaults>
</compile_context>

<pallas_src>
import functools

import jax
import jax.numpy as jnp
from jax import lax
from jax.experimental import pallas as pl
from jax.experimental.pallas import tpu as pltpu


def resblock_kernel(x_ref, w1_ref, b1_ref, w2_ref, b2_ref, o_ref, *,
                    height, width):
    """One batch element, channel-major lane-dense layout.

    x_ref  : (1, Cin, H*W)  raw input (pre-ReLU); also the residual source
    w1_ref : (Cmid, 9*Cin)  3x3 weights, last-axis index = (ky*3+kx)*Cin + ci
    b1_ref : (Cmid, 1)
    w2_ref : (Cout, Cmid)   1x1 weights
    b2_ref : (Cout, 1)
    o_ref  : (1, Cout, H*W)
    """
    _, cin, npix = x_ref.shape
    cmid = w1_ref.shape[0]
    cout = o_ref.shape[1]

    x = x_ref[0]                         # (Cin, P) raw input -> residual add
    xr = jnp.maximum(x, 0.0)             # ReLU(x)

    # Flat position -> (row, col); used to zero out taps that fall outside the
    # image (replaces the explicit zero-padded halo of v1).
    pos = lax.broadcasted_iota(jnp.int32, (1, npix), 1)
    if width & (width - 1) == 0:         # power-of-two width: cheap VPU bit ops
        row = pos >> (width.bit_length() - 1)
        col = pos & (width - 1)
    else:
        row = pos // width
        col = pos % width

    w1 = w1_ref[...]                     # (Cmid, 9*Cin), ~1 vreg
    w2 = w2_ref[...]                     # (Cout, Cmid)

    # --- 3x3 "same" conv: 9 lane-rotated taps x VPU broadcast MACs. ---
    # (At large channel counts replace this loop with one im2col MXU matmul.)
    acc = jnp.zeros((cmid, npix), jnp.float32)
    for k in range(9):
        dy, dx = k // 3 - 1, k % 3 - 1
        if dy == 0 and dx == 0:
            tap = xr
        else:
            off = dy * width + dx        # flat-index offset of this tap
            rolled = pltpu.roll(xr, (-off) % npix, axis=1)   # rolled[p] = xr[p+off]
            inside = ((row + dy >= 0) & (row + dy < height) &
                      (col + dx >= 0) & (col + dx < width))
            tap = rolled * jnp.where(inside, 1.0, 0.0)       # zero-pad borders
        for ci in range(cin):
            j = k * cin + ci
            # (Cmid, 1) weight column x (1, P) spatial row -> (Cmid, P)
            acc = acc + w1[:, j:j + 1] * tap[ci:ci + 1, :]
    h = jnp.maximum(acc + b1_ref[...], 0.0)                  # (Cmid, P)

    # --- 1x1 conv (channel mix) + bias + residual. ---
    y = jnp.zeros((cout, npix), jnp.float32)
    for cm in range(cmid):
        y = y + w2[:, cm:cm + 1] * h[cm:cm + 1, :]
    y = y + b2_ref[...]

    o_ref[0] = (x + y).astype(o_ref.dtype)                   # dense lane store


def resblock_forward(x_nchw, w1, b1, w2, b2):
    """x_nchw: (N, Cin, H, W); w1: (Cmid, Cin, 3, 3); w2: (Cout, Cmid, 1, 1)."""
    N, Cin, H, W = x_nchw.shape
    Cmid = w1.shape[0]
    Cout = w2.shape[0]
    assert Cout == Cin, "residual add requires in_channels == out_channels"
    P = H * W

    # Lane-dense layouts: flattened spatial index on lanes, channels on
    # sublanes.  All wrapper-side ops are free reshapes/transposes of tiny
    # weight tensors — no activation pad, no NHWC round trip.
    x_flat = x_nchw.reshape(N, Cin, P)
    w1_k = jnp.transpose(w1, (0, 2, 3, 1)).reshape(Cmid, 9 * Cin)  # [(ky*3+kx)*Cin+ci]
    w2_k = w2[:, :, 0, 0]                                          # (Cout, Cmid)
    b1_k = b1.reshape(Cmid, 1)
    b2_k = b2.reshape(Cout, 1)

    kernel = functools.partial(resblock_kernel, height=H, width=W)

    out_flat = pl.pallas_call(
        kernel,
        out_shape=jax.ShapeDtypeStruct((N, Cout, P), x_nchw.dtype),
        grid_spec=pltpu.PrefetchScalarGridSpec(
            num_scalar_prefetch=0,
            grid=(N,),
            in_specs=[
                pl.BlockSpec((1, Cin, P), lambda n: (n, 0, 0)),
                pl.BlockSpec((Cmid, 9 * Cin), lambda n: (0, 0)),
                pl.BlockSpec((Cmid, 1), lambda n: (0, 0)),
                pl.BlockSpec((Cout, Cmid), lambda n: (0, 0)),
                pl.BlockSpec((Cout, 1), lambda n: (0, 0)),
            ],
            out_specs=pl.BlockSpec((1, Cout, P), lambda n: (n, 0, 0)),
        ),
        compiler_params=pltpu.CompilerParams(
            dimension_semantics=("parallel",)),
    )(x_flat, w1_k, b1_k, w2_k, b2_k)

    return out_flat.reshape(N, Cout, H, W)


def resblock_reference(x_nchw, w1, b1, w2, b2):
    """Pure-JAX reference matching the PyTorch module (bn=False)."""
    h = jnp.maximum(x_nchw, 0.0)
    h = lax.conv_general_dilated(
        h, w1, window_strides=(1, 1), padding=((1, 1), (1, 1)),
        dimension_numbers=("NCHW", "OIHW", "NCHW")) + b1[None, :, None, None]
    h = jnp.maximum(h, 0.0)
    h = lax.conv_general_dilated(
        h, w2, window_strides=(1, 1), padding=((0, 0), (0, 0)),
        dimension_numbers=("NCHW", "OIHW", "NCHW")) + b2[None, :, None, None]
    return x_nchw + h


if __name__ == "__main__":
    # Small shapes consistent with the module's forward.
    N, Cin, H, W = 2, 4, 16, 16
    Cmid, Cout = Cin, Cin   # mid_channels defaults to out_channels; residual needs Cout==Cin

    key = jax.random.PRNGKey(0)
    kx, kw1, kb1, kw2, kb2 = jax.random.split(key, 5)

    x = jax.random.normal(kx, (N, Cin, H, W), dtype=jnp.float32)

    # Deterministic parameter init (PyTorch-style uniform fan-in bounds).
    bound1 = 1.0 / (Cin * 3 * 3) ** 0.5
    w1 = jax.random.uniform(kw1, (Cmid, Cin, 3, 3), jnp.float32, -bound1, bound1)
    b1 = jax.random.uniform(kb1, (Cmid,), jnp.float32, -bound1, bound1)
    bound2 = 1.0 / (Cmid * 1 * 1) ** 0.5
    w2 = jax.random.uniform(kw2, (Cout, Cmid, 1, 1), jnp.float32, -bound2, bound2)
    b2 = jax.random.uniform(kb2, (Cout,), jnp.float32, -bound2, bound2)

    out = resblock_forward(x, w1, b1, w2, b2)
    jax.block_until_ready(out)

    ref = resblock_reference(x, w1, b1, w2, b2)
    assert out.shape == ref.shape == (N, Cout, H, W)
    assert jnp.allclose(out, ref, atol=1e-4, rtol=1e-4), "mismatch vs reference"

    print("KERNEL_OK")
</pallas_src>

<mosaic_0001>
module attributes {stable_mosaic.version = 11 : i64} {
  func.func @resblock_kernel(%arg0: i32, %arg1: memref<1x4x256xf32, #tpu.memory_space<vmem>>, %arg2: memref<4x36xf32, #tpu.memory_space<vmem>>, %arg3: memref<4x1xf32, #tpu.memory_space<vmem>>, %arg4: memref<4x4xf32, #tpu.memory_space<vmem>>, %arg5: memref<4x1xf32, #tpu.memory_space<vmem>>, %arg6: memref<1x4x256xf32, #tpu.memory_space<vmem>>) attributes {dimension_semantics = [#tpu.dimension_semantics<parallel>], iteration_bounds = array<i64: 2>, scalar_prefetch = 0 : i64, scratch_operands = 0 : i64, tpu.core_type = #tpu.core_type<tc>, window_params = [{transform_indices = @transform_0, window_bounds = array<i64: 1, 4, 256>}, {pipeline_mode = #tpu.pipeline_mode<synchronous>, transform_indices = @transform_1, window_bounds = array<i64: 4, 36>}, {pipeline_mode = #tpu.pipeline_mode<synchronous>, transform_indices = @transform_2, window_bounds = array<i64: 4, 1>}, {pipeline_mode = #tpu.pipeline_mode<synchronous>, transform_indices = @transform_3, window_bounds = array<i64: 4, 4>}, {pipeline_mode = #tpu.pipeline_mode<synchronous>, transform_indices = @transform_4, window_bounds = array<i64: 4, 1>}, {transform_indices = @transform_5, window_bounds = array<i64: 1, 4, 256>}]} {
    %c0 = arith.constant 0 : index
    %c0_0 = arith.constant 0 : index
    %c0_1 = arith.constant 0 : index
    %0 = vector.load %arg1[%c0, %c0_0, %c0_1] : memref<1x4x256xf32, #tpu.memory_space<vmem>>, vector<1x4x256xf32>
    %1 = vector.shape_cast %0 : vector<1x4x256xf32> to vector<4x256xf32>
    %cst = arith.constant 0.000000e+00 : f32
    %2 = vector.broadcast %cst : f32 to vector<4x256xf32>
    %3 = arith.maximumf %1, %2 : vector<4x256xf32>
    %4 = tpu.iota {dimensions = array<i32: 1>} : vector<1x256xi32>
    %c4_i32 = arith.constant 4 : i32
    %5 = vector.broadcast %c4_i32 : i32 to vector<1x256xi32>
    %6 = arith.shrsi %4, %5 : vector<1x256xi32>
    %c15_i32 = arith.constant 15 : i32
    %7 = vector.broadcast %c15_i32 : i32 to vector<1x256xi32>
    %8 = arith.andi %4, %7 : vector<1x256xi32>
    %c0_2 = arith.constant 0 : index
    %c0_3 = arith.constant 0 : index
    %9 = vector.load %arg2[%c0_2, %c0_3] : memref<4x36xf32, #tpu.memory_space<vmem>>, vector<4x36xf32>
    %c0_4 = arith.constant 0 : index
    %c0_5 = arith.constant 0 : index
    %10 = vector.load %arg4[%c0_4, %c0_5] : memref<4x4xf32, #tpu.memory_space<vmem>>, vector<4x4xf32>
    %cst_6 = arith.constant 0.000000e+00 : f32
    %11 = vector.broadcast %cst_6 : f32 to vector<4x256xf32>
    %c17_i32 = arith.constant 17 : i32
    %12 = tpu.dynamic_rotate %3 by %c17_i32 dim 1 : vector<4x256xf32>, i32 -> vector<4x256xf32>
    %c-1_i32 = arith.constant -1 : i32
    %13 = vector.broadcast %c-1_i32 : i32 to vector<1x256xi32>
    %14 = arith.addi %6, %13 : vector<1x256xi32>
    %c0_i32 = arith.constant 0 : i32
    %15 = vector.broadcast %c0_i32 : i32 to vector<1x256xi32>
    %16 = arith.cmpi sge, %14, %15 : vector<1x256xi32>
    %c-1_i32_7 = arith.constant -1 : i32
    %17 = vector.broadcast %c-1_i32_7 : i32 to vector<1x256xi32>
    %18 = arith.addi %6, %17 : vector<1x256xi32>
    %c16_i32 = arith.constant 16 : i32
    %19 = vector.broadcast %c16_i32 : i32 to vector<1x256xi32>
    %20 = arith.cmpi slt, %18, %19 : vector<1x256xi32>
    %21 = arith.andi %16, %20 : vector<1x256xi1>
    %c-1_i32_8 = arith.constant -1 : i32
    %22 = vector.broadcast %c-1_i32_8 : i32 to vector<1x256xi32>
    %23 = arith.addi %8, %22 : vector<1x256xi32>
    %c0_i32_9 = arith.constant 0 : i32
    %24 = vector.broadcast %c0_i32_9 : i32 to vector<1x256xi32>
    %25 = arith.cmpi sge, %23, %24 : vector<1x256xi32>
    %26 = arith.andi %21, %25 : vector<1x256xi1>
    %c-1_i32_10 = arith.constant -1 : i32
    %27 = vector.broadcast %c-1_i32_10 : i32 to vector<1x256xi32>
    %28 = arith.addi %8, %27 : vector<1x256xi32>
    %c16_i32_11 = arith.constant 16 : i32
    %29 = vector.broadcast %c16_i32_11 : i32 to vector<1x256xi32>
    %30 = arith.cmpi slt, %28, %29 : vector<1x256xi32>
    %31 = arith.andi %26, %30 : vector<1x256xi1>
    %cst_12 = arith.constant 1.000000e+00 : f32
    %cst_13 = arith.constant 0.000000e+00 : f32
    %32 = vector.broadcast %cst_12 : f32 to vector<1x256xf32>
    %33 = vector.broadcast %cst_13 : f32 to vector<1x256xf32>
    %34 = arith.select %31, %32, %33 : vector<1x256xi1>, vector<1x256xf32>
    %35 = vector.broadcast %34 : vector<1x256xf32> to vector<4x256xf32>
    %36 = arith.mulf %12, %35 : vector<4x256xf32>
    %37 = vector.extract_strided_slice %9 {offsets = [0, 0], sizes = [4, 1], strides = [1, 1]} : vector<4x36xf32> to vector<4x1xf32>
    %38 = vector.extract_strided_slice %36 {offsets = [0, 0], sizes = [1, 256], strides = [1, 1]} : vector<4x256xf32> to vector<1x256xf32>
    %39 = vector.broadcast %37 : vector<4x1xf32> to vector<4x256xf32>
    %40 = vector.broadcast %38 : vector<1x256xf32> to vector<4x256xf32>
    %41 = arith.mulf %39, %40 : vector<4x256xf32>
    %42 = arith.addf %11, %41 : vector<4x256xf32>
    %43 = vector.extract_strided_slice %9 {offsets = [0, 1], sizes = [4, 1], strides = [1, 1]} : vector<4x36xf32> to vector<4x1xf32>
    %44 = vector.extract_strided_slice %36 {offsets = [1, 0], sizes = [1, 256], strides = [1, 1]} : vector<4x256xf32> to vector<1x256xf32>
    %45 = vector.broadcast %43 : vector<4x1xf32> to vector<4x256xf32>
    %46 = vector.broadcast %44 : vector<1x256xf32> to vector<4x256xf32>
    %47 = arith.mulf %45, %46 : vector<4x256xf32>
    %48 = arith.addf %42, %47 : vector<4x256xf32>
    %49 = vector.extract_strided_slice %9 {offsets = [0, 2], sizes = [4, 1], strides = [1, 1]} : vector<4x36xf32> to vector<4x1xf32>
    %50 = vector.extract_strided_slice %36 {offsets = [2, 0], sizes = [1, 256], strides = [1, 1]} : vector<4x256xf32> to vector<1x256xf32>
    %51 = vector.broadcast %49 : vector<4x1xf32> to vector<4x256xf32>
    %52 = vector.broadcast %50 : vector<1x256xf32> to vector<4x256xf32>
    %53 = arith.mulf %51, %52 : vector<4x256xf32>
    %54 = arith.addf %48, %53 : vector<4x256xf32>
    %55 = vector.extract_strided_slice %9 {offsets = [0, 3], sizes = [4, 1], strides = [1, 1]} : vector<4x36xf32> to vector<4x1xf32>
    %56 = vector.extract_strided_slice %36 {offsets = [3, 0], sizes = [1, 256], strides = [1, 1]} : vector<4x256xf32> to vector<1x256xf32>
    %57 = vector.broadcast %55 : vector<4x1xf32> to vector<4x256xf32>
    %58 = vector.broadcast %56 : vector<1x256xf32> to vector<4x256xf32>
    %59 = arith.mulf %57, %58 : vector<4x256xf32>
    %60 = arith.addf %54, %59 : vector<4x256xf32>
    %c16_i32_14 = arith.constant 16 : i32
    %61 = tpu.dynamic_rotate %3 by %c16_i32_14 dim 1 : vector<4x256xf32>, i32 -> vector<4x256xf32>
    %c-1_i32_15 = arith.constant -1 : i32
    %62 = vector.broadcast %c-1_i32_15 : i32 to vector<1x256xi32>
    %63 = arith.addi %6, %62 : vector<1x256xi32>
    %c0_i32_16 = arith.constant 0 : i32
    %64 = vector.broadcast %c0_i32_16 : i32 to vector<1x256xi32>
    %65 = arith.cmpi sge, %63, %64 : vector<1x256xi32>
    %c-1_i32_17 = arith.constant -1 : i32
    %66 = vector.broadcast %c-1_i32_17 : i32 to vector<1x256xi32>
    %67 = arith.addi %6, %66 : vector<1x256xi32>
    %c16_i32_18 = arith.constant 16 : i32
    %68 = vector.broadcast %c16_i32_18 : i32 to vector<1x256xi32>
    %69 = arith.cmpi slt, %67, %68 : vector<1x256xi32>
    %70 = arith.andi %65, %69 : vector<1x256xi1>
    %c0_i32_19 = arith.constant 0 : i32
    %71 = vector.broadcast %c0_i32_19 : i32 to vector<1x256xi32>
    %72 = arith.addi %8, %71 : vector<1x256xi32>
    %c0_i32_20 = arith.constant 0 : i32
    %73 = vector.broadcast %c0_i32_20 : i32 to vector<1x256xi32>
    %74 = arith.cmpi sge, %72, %73 : vector<1x256xi32>
    %75 = arith.andi %70, %74 : vector<1x256xi1>
    %c0_i32_21 = arith.constant 0 : i32
    %76 = vector.broadcast %c0_i32_21 : i32 to vector<1x256xi32>
    %77 = arith.addi %8, %76 : vector<1x256xi32>
    %c16_i32_22 = arith.constant 16 : i32
    %78 = vector.broadcast %c16_i32_22 : i32 to vector<1x256xi32>
    %79 = arith.cmpi slt, %77, %78 : vector<1x256xi32>
    %80 = arith.andi %75, %79 : vector<1x256xi1>
    %cst_23 = arith.constant 1.000000e+00 : f32
    %cst_24 = arith.constant 0.000000e+00 : f32
    %81 = vector.broadcast %cst_23 : f32 to vector<1x256xf32>
    %82 = vector.broadcast %cst_24 : f32 to vector<1x256xf32>
    %83 = arith.select %80, %81, %82 : vector<1x256xi1>, vector<1x256xf32>
    %84 = vector.broadcast %83 : vector<1x256xf32> to vector<4x256xf32>
    %85 = arith.mulf %61, %84 : vector<4x256xf32>
    %86 = vector.extract_strided_slice %9 {offsets = [0, 4], sizes = [4, 1], strides = [1, 1]} : vector<4x36xf32> to vector<4x1xf32>
    %87 = vector.extract_strided_slice %85 {offsets = [0, 0], sizes = [1, 256], strides = [1, 1]} : vector<4x256xf32> to vector<1x256xf32>
    %88 = vector.broadcast %86 : vector<4x1xf32> to vector<4x256xf32>
    %89 = vector.broadcast %87 : vector<1x256xf32> to vector<4x256xf32>
    %90 = arith.mulf %88, %89 : vector<4x256xf32>
    %91 = arith.addf %60, %90 : vector<4x256xf32>
    %92 = vector.extract_strided_slice %9 {offsets = [0, 5], sizes = [4, 1], strides = [1, 1]} : vector<4x36xf32> to vector<4x1xf32>
    %93 = vector.extract_strided_slice %85 {offsets = [1, 0], sizes = [1, 256], strides = [1, 1]} : vector<4x256xf32> to vector<1x256xf32>
    %94 = vector.broadcast %92 : vector<4x1xf32> to vector<4x256xf32>
    %95 = vector.broadcast %93 : vector<1x256xf32> to vector<4x256xf32>
    %96 = arith.mulf %94, %95 : vector<4x256xf32>
    %97 = arith.addf %91, %96 : vector<4x256xf32>
    %98 = vector.extract_strided_slice %9 {offsets = [0, 6], sizes = [4, 1], strides = [1, 1]} : vector<4x36xf32> to vector<4x1xf32>
    %99 = vector.extract_strided_slice %85 {offsets = [2, 0], sizes = [1, 256], strides = [1, 1]} : vector<4x256xf32> to vector<1x256xf32>
    %100 = vector.broadcast %98 : vector<4x1xf32> to vector<4x256xf32>
    %101 = vector.broadcast %99 : vector<1x256xf32> to vector<4x256xf32>
    %102 = arith.mulf %100, %101 : vector<4x256xf32>
    %103 = arith.addf %97, %102 : vector<4x256xf32>
    %104 = vector.extract_strided_slice %9 {offsets = [0, 7], sizes = [4, 1], strides = [1, 1]} : vector<4x36xf32> to vector<4x1xf32>
    %105 = vector.extract_strided_slice %85 {offsets = [3, 0], sizes = [1, 256], strides = [1, 1]} : vector<4x256xf32> to vector<1x256xf32>
    %106 = vector.broadcast %104 : vector<4x1xf32> to vector<4x256xf32>
    %107 = vector.broadcast %105 : vector<1x256xf32> to vector<4x256xf32>
    %108 = arith.mulf %106, %107 : vector<4x256xf32>
    %109 = arith.addf %103, %108 : vector<4x256xf32>
    %c15_i32_25 = arith.constant 15 : i32
    %110 = tpu.dynamic_rotate %3 by %c15_i32_25 dim 1 : vector<4x256xf32>, i32 -> vector<4x256xf32>
    %c-1_i32_26 = arith.constant -1 : i32
    %111 = vector.broadcast %c-1_i32_26 : i32 to vector<1x256xi32>
    %112 = arith.addi %6, %111 : vector<1x256xi32>
    %c0_i32_27 = arith.constant 0 : i32
    %113 = vector.broadcast %c0_i32_27 : i32 to vector<1x256xi32>
    %114 = arith.cmpi sge, %112, %113 : vector<1x256xi32>
    %c-1_i32_28 = arith.constant -1 : i32
    %115 = vector.broadcast %c-1_i32_28 : i32 to vector<1x256xi32>
    %116 = arith.addi %6, %115 : vector<1x256xi32>
    %c16_i32_29 = arith.constant 16 : i32
    %117 = vector.broadcast %c16_i32_29 : i32 to vector<1x256xi32>
    %118 = arith.cmpi slt, %116, %117 : vector<1x256xi32>
    %119 = arith.andi %114, %118 : vector<1x256xi1>
    %c1_i32 = arith.constant 1 : i32
    %120 = vector.broadcast %c1_i32 : i32 to vector<1x256xi32>
    %121 = arith.addi %8, %120 : vector<1x256xi32>
    %c0_i32_30 = arith.constant 0 : i32
    %122 = vector.broadcast %c0_i32_30 : i32 to vector<1x256xi32>
    %123 = arith.cmpi sge, %121, %122 : vector<1x256xi32>
    %124 = arith.andi %119, %123 : vector<1x256xi1>
    %c1_i32_31 = arith.constant 1 : i32
    %125 = vector.broadcast %c1_i32_31 : i32 to vector<1x256xi32>
    %126 = arith.addi %8, %125 : vector<1x256xi32>
    %c16_i32_32 = arith.constant 16 : i32
    %127 = vector.broadcast %c16_i32_32 : i32 to vector<1x256xi32>
    %128 = arith.cmpi slt, %126, %127 : vector<1x256xi32>
    %129 = arith.andi %124, %128 : vector<1x256xi1>
    %cst_33 = arith.constant 1.000000e+00 : f32
    %cst_34 = arith.constant 0.000000e+00 : f32
    %130 = vector.broadcast %cst_33 : f32 to vector<1x256xf32>
    %131 = vector.broadcast %cst_34 : f32 to vector<1x256xf32>
    %132 = arith.select %129, %130, %131 : vector<1x256xi1>, vector<1x256xf32>
    %133 = vector.broadcast %132 : vector<1x256xf32> to vector<4x256xf32>
    %134 = arith.mulf %110, %133 : vector<4x256xf32>
    %135 = vector.extract_strided_slice %9 {offsets = [0, 8], sizes = [4, 1], strides = [1, 1]} : vector<4x36xf32> to vector<4x1xf32>
    %136 = vector.extract_strided_slice %134 {offsets = [0, 0], sizes = [1, 256], strides = [1, 1]} : vector<4x256xf32> to vector<1x256xf32>
    %137 = vector.broadcast %135 : vector<4x1xf32> to vector<4x256xf32>
    %138 = vector.broadcast %136 : vector<1x256xf32> to vector<4x256xf32>
    %139 = arith.mulf %137, %138 : vector<4x256xf32>
    %140 = arith.addf %109, %139 : vector<4x256xf32>
    %141 = vector.extract_strided_slice %9 {offsets = [0, 9], sizes = [4, 1], strides = [1, 1]} : vector<4x36xf32> to vector<4x1xf32>
    %142 = vector.extract_strided_slice %134 {offsets = [1, 0], sizes = [1, 256], strides = [1, 1]} : vector<4x256xf32> to vector<1x256xf32>
    %143 = vector.broadcast %141 : vector<4x1xf32> to vector<4x256xf32>
    %144 = vector.broadcast %142 : vector<1x256xf32> to vector<4x256xf32>
    %145 = arith.mulf %143, %144 : vector<4x256xf32>
    %146 = arith.addf %140, %145 : vector<4x256xf32>
    %147 = vector.extract_strided_slice %9 {offsets = [0, 10], sizes = [4, 1], strides = [1, 1]} : vector<4x36xf32> to vector<4x1xf32>
    %148 = vector.extract_strided_slice %134 {offsets = [2, 0], sizes = [1, 256], strides = [1, 1]} : vector<4x256xf32> to vector<1x256xf32>
    %149 = vector.broadcast %147 : vector<4x1xf32> to vector<4x256xf32>
    %150 = vector.broadcast %148 : vector<1x256xf32> to vector<4x256xf32>
    %151 = arith.mulf %149, %150 : vector<4x256xf32>
    %152 = arith.addf %146, %151 : vector<4x256xf32>
    %153 = vector.extract_strided_slice %9 {offsets = [0, 11], sizes = [4, 1], strides = [1, 1]} : vector<4x36xf32> to vector<4x1xf32>
    %154 = vector.extract_strided_slice %134 {offsets = [3, 0], sizes = [1, 256], strides = [1, 1]} : vector<4x256xf32> to vector<1x256xf32>
    %155 = vector.broadcast %153 : vector<4x1xf32> to vector<4x256xf32>
    %156 = vector.broadcast %154 : vector<1x256xf32> to vector<4x256xf32>
    %157 = arith.mulf %155, %156 : vector<4x256xf32>
    %158 = arith.addf %152, %157 : vector<4x256xf32>
    %c1_i32_35 = arith.constant 1 : i32
    %159 = tpu.dynamic_rotate %3 by %c1_i32_35 dim 1 : vector<4x256xf32>, i32 -> vector<4x256xf32>
    %c0_i32_36 = arith.constant 0 : i32
    %160 = vector.broadcast %c0_i32_36 : i32 to vector<1x256xi32>
    %161 = arith.addi %6, %160 : vector<1x256xi32>
    %c0_i32_37 = arith.constant 0 : i32
    %162 = vector.broadcast %c0_i32_37 : i32 to vector<1x256xi32>
    %163 = arith.cmpi sge, %161, %162 : vector<1x256xi32>
    %c0_i32_38 = arith.constant 0 : i32
    %164 = vector.broadcast %c0_i32_38 : i32 to vector<1x256xi32>
    %165 = arith.addi %6, %164 : vector<1x256xi32>
    %c16_i32_39 = arith.constant 16 : i32
    %166 = vector.broadcast %c16_i32_39 : i32 to vector<1x256xi32>
    %167 = arith.cmpi slt, %165, %166 : vector<1x256xi32>
    %168 = arith.andi %163, %167 : vector<1x256xi1>
    %c-1_i32_40 = arith.constant -1 : i32
    %169 = vector.broadcast %c-1_i32_40 : i32 to vector<1x256xi32>
    %170 = arith.addi %8, %169 : vector<1x256xi32>
    %c0_i32_41 = arith.constant 0 : i32
    %171 = vector.broadcast %c0_i32_41 : i32 to vector<1x256xi32>
    %172 = arith.cmpi sge, %170, %171 : vector<1x256xi32>
    %173 = arith.andi %168, %172 : vector<1x256xi1>
    %c-1_i32_42 = arith.constant -1 : i32
    %174 = vector.broadcast %c-1_i32_42 : i32 to vector<1x256xi32>
    %175 = arith.addi %8, %174 : vector<1x256xi32>
    %c16_i32_43 = arith.constant 16 : i32
    %176 = vector.broadcast %c16_i32_43 : i32 to vector<1x256xi32>
    %177 = arith.cmpi slt, %175, %176 : vector<1x256xi32>
    %178 = arith.andi %173, %177 : vector<1x256xi1>
    %cst_44 = arith.constant 1.000000e+00 : f32
    %cst_45 = arith.constant 0.000000e+00 : f32
    %179 = vector.broadcast %cst_44 : f32 to vector<1x256xf32>
    %180 = vector.broadcast %cst_45 : f32 to vector<1x256xf32>
    %181 = arith.select %178, %179, %180 : vector<1x256xi1>, vector<1x256xf32>
    %182 = vector.broadcast %181 : vector<1x256xf32> to vector<4x256xf32>
    %183 = arith.mulf %159, %182 : vector<4x256xf32>
    %184 = vector.extract_strided_slice %9 {offsets = [0, 12], sizes = [4, 1], strides = [1, 1]} : vector<4x36xf32> to vector<4x1xf32>
    %185 = vector.extract_strided_slice %183 {offsets = [0, 0], sizes = [1, 256], strides = [1, 1]} : vector<4x256xf32> to vector<1x256xf32>
    %186 = vector.broadcast %184 : vector<4x1xf32> to vector<4x256xf32>
    %187 = vector.broadcast %185 : vector<1x256xf32> to vector<4x256xf32>
    %188 = arith.mulf %186, %187 : vector<4x256xf32>
    %189 = arith.addf %158, %188 : vector<4x256xf32>
    %190 = vector.extract_strided_slice %9 {offsets = [0, 13], sizes = [4, 1], strides = [1, 1]} : vector<4x36xf32> to vector<4x1xf32>
    %191 = vector.extract_strided_slice %183 {offsets = [1, 0], sizes = [1, 256], strides = [1, 1]} : vector<4x256xf32> to vector<1x256xf32>
    %192 = vector.broadcast %190 : vector<4x1xf32> to vector<4x256xf32>
    %193 = vector.broadcast %191 : vector<1x256xf32> to vector<4x256xf32>
    %194 = arith.mulf %192, %193 : vector<4x256xf32>
    %195 = arith.addf %189, %194 : vector<4x256xf32>
    %196 = vector.extract_strided_slice %9 {offsets = [0, 14], sizes = [4, 1], strides = [1, 1]} : vector<4x36xf32> to vector<4x1xf32>
    %197 = vector.extract_strided_slice %183 {offsets = [2, 0], sizes = [1, 256], strides = [1, 1]} : vector<4x256xf32> to vector<1x256xf32>
    %198 = vector.broadcast %196 : vector<4x1xf32> to vector<4x256xf32>
    %199 = vector.broadcast %197 : vector<1x256xf32> to vector<4x256xf32>
    %200 = arith.mulf %198, %199 : vector<4x256xf32>
    %201 = arith.addf %195, %200 : vector<4x256xf32>
    %202 = vector.extract_strided_slice %9 {offsets = [0, 15], sizes = [4, 1], strides = [1, 1]} : vector<4x36xf32> to vector<4x1xf32>
    %203 = vector.extract_strided_slice %183 {offsets = [3, 0], sizes = [1, 256], strides = [1, 1]} : vector<4x256xf32> to vector<1x256xf32>
    %204 = vector.broadcast %202 : vector<4x1xf32> to vector<4x256xf32>
    %205 = vector.broadcast %203 : vector<1x256xf32> to vector<4x256xf32>
    %206 = arith.mulf %204, %205 : vector<4x256xf32>
    %207 = arith.addf %201, %206 : vector<4x256xf32>
    %208 = vector.extract_strided_slice %9 {offsets = [0, 16], sizes = [4, 1], strides = [1, 1]} : vector<4x36xf32> to vector<4x1xf32>
    %209 = vector.extract_strided_slice %3 {offsets = [0, 0], sizes = [1, 256], strides = [1, 1]} : vector<4x256xf32> to vector<1x256xf32>
    %210 = vector.broadcast %208 : vector<4x1xf32> to vector<4x256xf32>
    %211 = vector.broadcast %209 : vector<1x256xf32> to vector<4x256xf32>
    %212 = arith.mulf %210, %211 : vector<4x256xf32>
    %213 = arith.addf %207, %212 : vector<4x256xf32>
    %214 = vector.extract_strided_slice %9 {offsets = [0, 17], sizes = [4, 1], strides = [1, 1]} : vector<4x36xf32> to vector<4x1xf32>
    %215 = vector.extract_strided_slice %3 {offsets = [1, 0], sizes = [1, 256], strides = [1, 1]} : vector<4x256xf32> to vector<1x256xf32>
    %216 = vector.broadcast %214 : vector<4x1xf32> to vector<4x256xf32>
    %217 = vector.broadcast %215 : vector<1x256xf32> to vector<4x256xf32>
    %218 = arith.mulf %216, %217 : vector<4x256xf32>
    %219 = arith.addf %213, %218 : vector<4x256xf32>
    %220 = vector.extract_strided_slice %9 {offsets = [0, 18], sizes = [4, 1], strides = [1, 1]} : vector<4x36xf32> to vector<4x1xf32>
    %221 = vector.extract_strided_slice %3 {offsets = [2, 0], sizes = [1, 256], strides = [1, 1]} : vector<4x256xf32> to vector<1x256xf32>
    %222 = vector.broadcast %220 : vector<4x1xf32> to vector<4x256xf32>
    %223 = vector.broadcast %221 : vector<1x256xf32> to vector<4x256xf32>
    %224 = arith.mulf %222, %223 : vector<4x256xf32>
    %225 = arith.addf %219, %224 : vector<4x256xf32>
    %226 = vector.extract_strided_slice %9 {offsets = [0, 19], sizes = [4, 1], strides = [1, 1]} : vector<4x36xf32> to vector<4x1xf32>
    %227 = vector.extract_strided_slice %3 {offsets = [3, 0], sizes = [1, 256], strides = [1, 1]} : vector<4x256xf32> to vector<1x256xf32>
    %228 = vector.broadcast %226 : vector<4x1xf32> to vector<4x256xf32>
    %229 = vector.broadcast %227 : vector<1x256xf32> to vector<4x256xf32>
    %230 = arith.mulf %228, %229 : vector<4x256xf32>
    %231 = arith.addf %225, %230 : vector<4x256xf32>
    %c255_i32 = arith.constant 255 : i32
    %232 = tpu.dynamic_rotate %3 by %c255_i32 dim 1 : vector<4x256xf32>, i32 -> vector<4x256xf32>
    %c0_i32_46 = arith.constant 0 : i32
    %233 = vector.broadcast %c0_i32_46 : i32 to vector<1x256xi32>
    %234 = arith.addi %6, %233 : vector<1x256xi32>
    %c0_i32_47 = arith.constant 0 : i32
    %235 = vector.broadcast %c0_i32_47 : i32 to vector<1x256xi32>
    %236 = arith.cmpi sge, %234, %235 : vector<1x256xi32>
    %c0_i32_48 = arith.constant 0 : i32
    %237 = vector.broadcast %c0_i32_48 : i32 to vector<1x256xi32>
    %238 = arith.addi %6, %237 : vector<1x256xi32>
    %c16_i32_49 = arith.constant 16 : i32
    %239 = vector.broadcast %c16_i32_49 : i32 to vector<1x256xi32>
    %240 = arith.cmpi slt, %238, %239 : vector<1x256xi32>
    %241 = arith.andi %236, %240 : vector<1x256xi1>
    %c1_i32_50 = arith.constant 1 : i32
    %242 = vector.broadcast %c1_i32_50 : i32 to vector<1x256xi32>
    %243 = arith.addi %8, %242 : vector<1x256xi32>
    %c0_i32_51 = arith.constant 0 : i32
    %244 = vector.broadcast %c0_i32_51 : i32 to vector<1x256xi32>
    %245 = arith.cmpi sge, %243, %244 : vector<1x256xi32>
    %246 = arith.andi %241, %245 : vector<1x256xi1>
    %c1_i32_52 = arith.constant 1 : i32
    %247 = vector.broadcast %c1_i32_52 : i32 to vector<1x256xi32>
    %248 = arith.addi %8, %247 : vector<1x256xi32>
    %c16_i32_53 = arith.constant 16 : i32
    %249 = vector.broadcast %c16_i32_53 : i32 to vector<1x256xi32>
    %250 = arith.cmpi slt, %248, %249 : vector<1x256xi32>
    %251 = arith.andi %246, %250 : vector<1x256xi1>
    %cst_54 = arith.constant 1.000000e+00 : f32
    %cst_55 = arith.constant 0.000000e+00 : f32
    %252 = vector.broadcast %cst_54 : f32 to vector<1x256xf32>
    %253 = vector.broadcast %cst_55 : f32 to vector<1x256xf32>
    %254 = arith.select %251, %252, %253 : vector<1x256xi1>, vector<1x256xf32>
    %255 = vector.broadcast %254 : vector<1x256xf32> to vector<4x256xf32>
    %256 = arith.mulf %232, %255 : vector<4x256xf32>
    %257 = vector.extract_strided_slice %9 {offsets = [0, 20], sizes = [4, 1], strides = [1, 1]} : vector<4x36xf32> to vector<4x1xf32>
    %258 = vector.extract_strided_slice %256 {offsets = [0, 0], sizes = [1, 256], strides = [1, 1]} : vector<4x256xf32> to vector<1x256xf32>
    %259 = vector.broadcast %257 : vector<4x1xf32> to vector<4x256xf32>
    %260 = vector.broadcast %258 : vector<1x256xf32> to vector<4x256xf32>
    %261 = arith.mulf %259, %260 : vector<4x256xf32>
    %262 = arith.addf %231, %261 : vector<4x256xf32>
    %263 = vector.extract_strided_slice %9 {offsets = [0, 21], sizes = [4, 1], strides = [1, 1]} : vector<4x36xf32> to vector<4x1xf32>
    %264 = vector.extract_strided_slice %256 {offsets = [1, 0], sizes = [1, 256], strides = [1, 1]} : vector<4x256xf32> to vector<1x256xf32>
    %265 = vector.broadcast %263 : vector<4x1xf32> to vector<4x256xf32>
    %266 = vector.broadcast %264 : vector<1x256xf32> to vector<4x256xf32>
    %267 = arith.mulf %265, %266 : vector<4x256xf32>
    %268 = arith.addf %262, %267 : vector<4x256xf32>
    %269 = vector.extract_strided_slice %9 {offsets = [0, 22], sizes = [4, 1], strides = [1, 1]} : vector<4x36xf32> to vector<4x1xf32>
    %270 = vector.extract_strided_slice %256 {offsets = [2, 0], sizes = [1, 256], strides = [1, 1]} : vector<4x256xf32> to vector<1x256xf32>
    %271 = vector.broadcast %269 : vector<4x1xf32> to vector<4x256xf32>
    %272 = vector.broadcast %270 : vector<1x256xf32> to vector<4x256xf32>
    %273 = arith.mulf %271, %272 : vector<4x256xf32>
    %274 = arith.addf %268, %273 : vector<4x256xf32>
    %275 = vector.extract_strided_slice %9 {offsets = [0, 23], sizes = [4, 1], strides = [1, 1]} : vector<4x36xf32> to vector<4x1xf32>
    %276 = vector.extract_strided_slice %256 {offsets = [3, 0], sizes = [1, 256], strides = [1, 1]} : vector<4x256xf32> to vector<1x256xf32>
    %277 = vector.broadcast %275 : vector<4x1xf32> to vector<4x256xf32>
    %278 = vector.broadcast %276 : vector<1x256xf32> to vector<4x256xf32>
    %279 = arith.mulf %277, %278 : vector<4x256xf32>
    %280 = arith.addf %274, %279 : vector<4x256xf32>
    %c241_i32 = arith.constant 241 : i32
    %281 = tpu.dynamic_rotate %3 by %c241_i32 dim 1 : vector<4x256xf32>, i32 -> vector<4x256xf32>
    %c1_i32_56 = arith.constant 1 : i32
    %282 = vector.broadcast %c1_i32_56 : i32 to vector<1x256xi32>
    %283 = arith.addi %6, %282 : vector<1x256xi32>
    %c0_i32_57 = arith.constant 0 : i32
    %284 = vector.broadcast %c0_i32_57 : i32 to vector<1x256xi32>
    %285 = arith.cmpi sge, %283, %284 : vector<1x256xi32>
    %c1_i32_58 = arith.constant 1 : i32
    %286 = vector.broadcast %c1_i32_58 : i32 to vector<1x256xi32>
    %287 = arith.addi %6, %286 : vector<1x256xi32>
    %c16_i32_59 = arith.constant 16 : i32
    %288 = vector.broadcast %c16_i32_59 : i32 to vector<1x256xi32>
    %289 = arith.cmpi slt, %287, %288 : vector<1x256xi32>
    %290 = arith.andi %285, %289 : vector<1x256xi1>
    %c-1_i32_60 = arith.constant -1 : i32
    %291 = vector.broadcast %c-1_i32_60 : i32 to vector<1x256xi32>
    %292 = arith.addi %8, %291 : vector<1x256xi32>
    %c0_i32_61 = arith.constant 0 : i32
    %293 = vector.broadcast %c0_i32_61 : i32 to vector<1x256xi32>
    %294 = arith.cmpi sge, %292, %293 : vector<1x256xi32>
    %295 = arith.andi %290, %294 : vector<1x256xi1>
    %c-1_i32_62 = arith.constant -1 : i32
    %296 = vector.broadcast %c-1_i32_62 : i32 to vector<1x256xi32>
    %297 = arith.addi %8, %296 : vector<1x256xi32>
    %c16_i32_63 = arith.constant 16 : i32
    %298 = vector.broadcast %c16_i32_63 : i32 to vector<1x256xi32>
    %299 = arith.cmpi slt, %297, %298 : vector<1x256xi32>
    %300 = arith.andi %295, %299 : vector<1x256xi1>
    %cst_64 = arith.constant 1.000000e+00 : f32
    %cst_65 = arith.constant 0.000000e+00 : f32
    %301 = vector.broadcast %cst_64 : f32 to vector<1x256xf32>
    %302 = vector.broadcast %cst_65 : f32 to vector<1x256xf32>
    %303 = arith.select %300, %301, %302 : vector<1x256xi1>, vector<1x256xf32>
    %304 = vector.broadcast %303 : vector<1x256xf32> to vector<4x256xf32>
    %305 = arith.mulf %281, %304 : vector<4x256xf32>
    %306 = vector.extract_strided_slice %9 {offsets = [0, 24], sizes = [4, 1], strides = [1, 1]} : vector<4x36xf32> to vector<4x1xf32>
    %307 = vector.extract_strided_slice %305 {offsets = [0, 0], sizes = [1, 256], strides = [1, 1]} : vector<4x256xf32> to vector<1x256xf32>
    %308 = vector.broadcast %306 : vector<4x1xf32> to vector<4x256xf32>
    %309 = vector.broadcast %307 : vector<1x256xf32> to vector<4x256xf32>
    %310 = arith.mulf %308, %309 : vector<4x256xf32>
    %311 = arith.addf %280, %310 : vector<4x256xf32>
    %312 = vector.extract_strided_slice %9 {offsets = [0, 25], sizes = [4, 1], strides = [1, 1]} : vector<4x36xf32> to vector<4x1xf32>
    %313 = vector.extract_strided_slice %305 {offsets = [1, 0], sizes = [1, 256], strides = [1, 1]} : vector<4x256xf32> to vector<1x256xf32>
    %314 = vector.broadcast %312 : vector<4x1xf32> to vector<4x256xf32>
    %315 = vector.broadcast %313 : vector<1x256xf32> to vector<4x256xf32>
    %316 = arith.mulf %314, %315 : vector<4x256xf32>
    %317 = arith.addf %311, %316 : vector<4x256xf32>
    %318 = vector.extract_strided_slice %9 {offsets = [0, 26], sizes = [4, 1], strides = [1, 1]} : vector<4x36xf32> to vector<4x1xf32>
    %319 = vector.extract_strided_slice %305 {offsets = [2, 0], sizes = [1, 256], strides = [1, 1]} : vector<4x256xf32> to vector<1x256xf32>
    %320 = vector.broadcast %318 : vector<4x1xf32> to vector<4x256xf32>
    %321 = vector.broadcast %319 : vector<1x256xf32> to vector<4x256xf32>
    %322 = arith.mulf %320, %321 : vector<4x256xf32>
    %323 = arith.addf %317, %322 : vector<4x256xf32>
    %324 = vector.extract_strided_slice %9 {offsets = [0, 27], sizes = [4, 1], strides = [1, 1]} : vector<4x36xf32> to vector<4x1xf32>
    %325 = vector.extract_strided_slice %305 {offsets = [3, 0], sizes = [1, 256], strides = [1, 1]} : vector<4x256xf32> to vector<1x256xf32>
    %326 = vector.broadcast %324 : vector<4x1xf32> to vector<4x256xf32>
    %327 = vector.broadcast %325 : vector<1x256xf32> to vector<4x256xf32>
    %328 = arith.mulf %326, %327 : vector<4x256xf32>
    %329 = arith.addf %323, %328 : vector<4x256xf32>
    %c240_i32 = arith.constant 240 : i32
    %330 = tpu.dynamic_rotate %3 by %c240_i32 dim 1 : vector<4x256xf32>, i32 -> vector<4x256xf32>
    %c1_i32_66 = arith.constant 1 : i32
    %331 = vector.broadcast %c1_i32_66 : i32 to vector<1x256xi32>
    %332 = arith.addi %6, %331 : vector<1x256xi32>
    %c0_i32_67 = arith.constant 0 : i32
    %333 = vector.broadcast %c0_i32_67 : i32 to vector<1x256xi32>
    %334 = arith.cmpi sge, %332, %333 : vector<1x256xi32>
    %c1_i32_68 = arith.constant 1 : i32
    %335 = vector.broadcast %c1_i32_68 : i32 to vector<1x256xi32>
    %336 = arith.addi %6, %335 : vector<1x256xi32>
    %c16_i32_69 = arith.constant 16 : i32
    %337 = vector.broadcast %c16_i32_69 : i32 to vector<1x256xi32>
    %338 = arith.cmpi slt, %336, %337 : vector<1x256xi32>
    %339 = arith.andi %334, %338 : vector<1x256xi1>
    %c0_i32_70 = arith.constant 0 : i32
    %340 = vector.broadcast %c0_i32_70 : i32 to vector<1x256xi32>
    %341 = arith.addi %8, %340 : vector<1x256xi32>
    %c0_i32_71 = arith.constant 0 : i32
    %342 = vector.broadcast %c0_i32_71 : i32 to vector<1x256xi32>
    %343 = arith.cmpi sge, %341, %342 : vector<1x256xi32>
    %344 = arith.andi %339, %343 : vector<1x256xi1>
    %c0_i32_72 = arith.constant 0 : i32
    %345 = vector.broadcast %c0_i32_72 : i32 to vector<1x256xi32>
    %346 = arith.addi %8, %345 : vector<1x256xi32>
    %c16_i32_73 = arith.constant 16 : i32
    %347 = vector.broadcast %c16_i32_73 : i32 to vector<1x256xi32>
    %348 = arith.cmpi slt, %346, %347 : vector<1x256xi32>
    %349 = arith.andi %344, %348 : vector<1x256xi1>
    %cst_74 = arith.constant 1.000000e+00 : f32
    %cst_75 = arith.constant 0.000000e+00 : f32
    %350 = vector.broadcast %cst_74 : f32 to vector<1x256xf32>
    %351 = vector.broadcast %cst_75 : f32 to vector<1x256xf32>
    %352 = arith.select %349, %350, %351 : vector<1x256xi1>, vector<1x256xf32>
    %353 = vector.broadcast %352 : vector<1x256xf32> to vector<4x256xf32>
    %354 = arith.mulf %330, %353 : vector<4x256xf32>
    %355 = vector.extract_strided_slice %9 {offsets = [0, 28], sizes = [4, 1], strides = [1, 1]} : vector<4x36xf32> to vector<4x1xf32>
    %356 = vector.extract_strided_slice %354 {offsets = [0, 0], sizes = [1, 256], strides = [1, 1]} : vector<4x256xf32> to vector<1x256xf32>
    %357 = vector.broadcast %355 : vector<4x1xf32> to vector<4x256xf32>
    %358 = vector.broadcast %356 : vector<1x256xf32> to vector<4x256xf32>
    %359 = arith.mulf %357, %358 : vector<4x256xf32>
    %360 = arith.addf %329, %359 : vector<4x256xf32>
    %361 = vector.extract_strided_slice %9 {offsets = [0, 29], sizes = [4, 1], strides = [1, 1]} : vector<4x36xf32> to vector<4x1xf32>
    %362 = vector.extract_strided_slice %354 {offsets = [1, 0], sizes = [1, 256], strides = [1, 1]} : vector<4x256xf32> to vector<1x256xf32>
    %363 = vector.broadcast %361 : vector<4x1xf32> to vector<4x256xf32>
    %364 = vector.broadcast %362 : vector<1x256xf32> to vector<4x256xf32>
    %365 = arith.mulf %363, %364 : vector<4x256xf32>
    %366 = arith.addf %360, %365 : vector<4x256xf32>
    %367 = vector.extract_strided_slice %9 {offsets = [0, 30], sizes = [4, 1], strides = [1, 1]} : vector<4x36xf32> to vector<4x1xf32>
    %368 = vector.extract_strided_slice %354 {offsets = [2, 0], sizes = [1, 256], strides = [1, 1]} : vector<4x256xf32> to vector<1x256xf32>
    %369 = vector.broadcast %367 : vector<4x1xf32> to vector<4x256xf32>
    %370 = vector.broadcast %368 : vector<1x256xf32> to vector<4x256xf32>
    %371 = arith.mulf %369, %370 : vector<4x256xf32>
    %372 = arith.addf %366, %371 : vector<4x256xf32>
    %373 = vector.extract_strided_slice %9 {offsets = [0, 31], sizes = [4, 1], strides = [1, 1]} : vector<4x36xf32> to vector<4x1xf32>
    %374 = vector.extract_strided_slice %354 {offsets = [3, 0], sizes = [1, 256], strides = [1, 1]} : vector<4x256xf32> to vector<1x256xf32>
    %375 = vector.broadcast %373 : vector<4x1xf32> to vector<4x256xf32>
    %376 = vector.broadcast %374 : vector<1x256xf32> to vector<4x256xf32>
    %377 = arith.mulf %375, %376 : vector<4x256xf32>
    %378 = arith.addf %372, %377 : vector<4x256xf32>
    %c239_i32 = arith.constant 239 : i32
    %379 = tpu.dynamic_rotate %3 by %c239_i32 dim 1 : vector<4x256xf32>, i32 -> vector<4x256xf32>
    %c1_i32_76 = arith.constant 1 : i32
    %380 = vector.broadcast %c1_i32_76 : i32 to vector<1x256xi32>
    %381 = arith.addi %6, %380 : vector<1x256xi32>
    %c0_i32_77 = arith.constant 0 : i32
    %382 = vector.broadcast %c0_i32_77 : i32 to vector<1x256xi32>
    %383 = arith.cmpi sge, %381, %382 : vector<1x256xi32>
    %c1_i32_78 = arith.constant 1 : i32
    %384 = vector.broadcast %c1_i32_78 : i32 to vector<1x256xi32>
    %385 = arith.addi %6, %384 : vector<1x256xi32>
    %c16_i32_79 = arith.constant 16 : i32
    %386 = vector.broadcast %c16_i32_79 : i32 to vector<1x256xi32>
    %387 = arith.cmpi slt, %385, %386 : vector<1x256xi32>
    %388 = arith.andi %383, %387 : vector<1x256xi1>
    %c1_i32_80 = arith.constant 1 : i32
    %389 = vector.broadcast %c1_i32_80 : i32 to vector<1x256xi32>
    %390 = arith.addi %8, %389 : vector<1x256xi32>
    %c0_i32_81 = arith.constant 0 : i32
    %391 = vector.broadcast %c0_i32_81 : i32 to vector<1x256xi32>
    %392 = arith.cmpi sge, %390, %391 : vector<1x256xi32>
    %393 = arith.andi %388, %392 : vector<1x256xi1>
    %c1_i32_82 = arith.constant 1 : i32
    %394 = vector.broadcast %c1_i32_82 : i32 to vector<1x256xi32>
    %395 = arith.addi %8, %394 : vector<1x256xi32>
    %c16_i32_83 = arith.constant 16 : i32
    %396 = vector.broadcast %c16_i32_83 : i32 to vector<1x256xi32>
    %397 = arith.cmpi slt, %395, %396 : vector<1x256xi32>
    %398 = arith.andi %393, %397 : vector<1x256xi1>
    %cst_84 = arith.constant 1.000000e+00 : f32
    %cst_85 = arith.constant 0.000000e+00 : f32
    %399 = vector.broadcast %cst_84 : f32 to vector<1x256xf32>
    %400 = vector.broadcast %cst_85 : f32 to vector<1x256xf32>
    %401 = arith.select %398, %399, %400 : vector<1x256xi1>, vector<1x256xf32>
    %402 = vector.broadcast %401 : vector<1x256xf32> to vector<4x256xf32>
    %403 = arith.mulf %379, %402 : vector<4x256xf32>
    %404 = vector.extract_strided_slice %9 {offsets = [0, 32], sizes = [4, 1], strides = [1, 1]} : vector<4x36xf32> to vector<4x1xf32>
    %405 = vector.extract_strided_slice %403 {offsets = [0, 0], sizes = [1, 256], strides = [1, 1]} : vector<4x256xf32> to vector<1x256xf32>
    %406 = vector.broadcast %404 : vector<4x1xf32> to vector<4x256xf32>
    %407 = vector.broadcast %405 : vector<1x256xf32> to vector<4x256xf32>
    %408 = arith.mulf %406, %407 : vector<4x256xf32>
    %409 = arith.addf %378, %408 : vector<4x256xf32>
    %410 = vector.extract_strided_slice %9 {offsets = [0, 33], sizes = [4, 1], strides = [1, 1]} : vector<4x36xf32> to vector<4x1xf32>
    %411 = vector.extract_strided_slice %403 {offsets = [1, 0], sizes = [1, 256], strides = [1, 1]} : vector<4x256xf32> to vector<1x256xf32>
    %412 = vector.broadcast %410 : vector<4x1xf32> to vector<4x256xf32>
    %413 = vector.broadcast %411 : vector<1x256xf32> to vector<4x256xf32>
    %414 = arith.mulf %412, %413 : vector<4x256xf32>
    %415 = arith.addf %409, %414 : vector<4x256xf32>
    %416 = vector.extract_strided_slice %9 {offsets = [0, 34], sizes = [4, 1], strides = [1, 1]} : vector<4x36xf32> to vector<4x1xf32>
    %417 = vector.extract_strided_slice %403 {offsets = [2, 0], sizes = [1, 256], strides = [1, 1]} : vector<4x256xf32> to vector<1x256xf32>
    %418 = vector.broadcast %416 : vector<4x1xf32> to vector<4x256xf32>
    %419 = vector.broadcast %417 : vector<1x256xf32> to vector<4x256xf32>
    %420 = arith.mulf %418, %419 : vector<4x256xf32>
    %421 = arith.addf %415, %420 : vector<4x256xf32>
    %422 = vector.extract_strided_slice %9 {offsets = [0, 35], sizes = [4, 1], strides = [1, 1]} : vector<4x36xf32> to vector<4x1xf32>
    %423 = vector.extract_strided_slice %403 {offsets = [3, 0], sizes = [1, 256], strides = [1, 1]} : vector<4x256xf32> to vector<1x256xf32>
    %424 = vector.broadcast %422 : vector<4x1xf32> to vector<4x256xf32>
    %425 = vector.broadcast %423 : vector<1x256xf32> to vector<4x256xf32>
    %426 = arith.mulf %424, %425 : vector<4x256xf32>
    %427 = arith.addf %421, %426 : vector<4x256xf32>
    %c0_86 = arith.constant 0 : index
    %c0_87 = arith.constant 0 : index
    %428 = vector.load %arg3[%c0_86, %c0_87] : memref<4x1xf32, #tpu.memory_space<vmem>>, vector<4x1xf32>
    %429 = vector.broadcast %428 : vector<4x1xf32> to vector<4x256xf32>
    %430 = arith.addf %427, %429 : vector<4x256xf32>
    %cst_88 = arith.constant 0.000000e+00 : f32
    %431 = vector.broadcast %cst_88 : f32 to vector<4x256xf32>
    %432 = arith.maximumf %430, %431 : vector<4x256xf32>
    %cst_89 = arith.constant 0.000000e+00 : f32
    %433 = vector.broadcast %cst_89 : f32 to vector<4x256xf32>
    %434 = vector.extract_strided_slice %10 {offsets = [0, 0], sizes = [4, 1], strides = [1, 1]} : vector<4x4xf32> to vector<4x1xf32>
    %435 = vector.extract_strided_slice %432 {offsets = [0, 0], sizes = [1, 256], strides = [1, 1]} : vector<4x256xf32> to vector<1x256xf32>
    %436 = vector.broadcast %434 : vector<4x1xf32> to vector<4x256xf32>
    %437 = vector.broadcast %435 : vector<1x256xf32> to vector<4x256xf32>
    %438 = arith.mulf %436, %437 : vector<4x256xf32>
    %439 = arith.addf %433, %438 : vector<4x256xf32>
    %440 = vector.extract_strided_slice %10 {offsets = [0, 1], sizes = [4, 1], strides = [1, 1]} : vector<4x4xf32> to vector<4x1xf32>
    %441 = vector.extract_strided_slice %432 {offsets = [1, 0], sizes = [1, 256], strides = [1, 1]} : vector<4x256xf32> to vector<1x256xf32>
    %442 = vector.broadcast %440 : vector<4x1xf32> to vector<4x256xf32>
    %443 = vector.broadcast %441 : vector<1x256xf32> to vector<4x256xf32>
    %444 = arith.mulf %442, %443 : vector<4x256xf32>
    %445 = arith.addf %439, %444 : vector<4x256xf32>
    %446 = vector.extract_strided_slice %10 {offsets = [0, 2], sizes = [4, 1], strides = [1, 1]} : vector<4x4xf32> to vector<4x1xf32>
    %447 = vector.extract_strided_slice %432 {offsets = [2, 0], sizes = [1, 256], strides = [1, 1]} : vector<4x256xf32> to vector<1x256xf32>
    %448 = vector.broadcast %446 : vector<4x1xf32> to vector<4x256xf32>
    %449 = vector.broadcast %447 : vector<1x256xf32> to vector<4x256xf32>
    %450 = arith.mulf %448, %449 : vector<4x256xf32>
    %451 = arith.addf %445, %450 : vector<4x256xf32>
    %452 = vector.extract_strided_slice %10 {offsets = [0, 3], sizes = [4, 1], strides = [1, 1]} : vector<4x4xf32> to vector<4x1xf32>
    %453 = vector.extract_strided_slice %432 {offsets = [3, 0], sizes = [1, 256], strides = [1, 1]} : vector<4x256xf32> to vector<1x256xf32>
    %454 = vector.broadcast %452 : vector<4x1xf32> to vector<4x256xf32>
    %455 = vector.broadcast %453 : vector<1x256xf32> to vector<4x256xf32>
    %456 = arith.mulf %454, %455 : vector<4x256xf32>
    %457 = arith.addf %451, %456 : vector<4x256xf32>
    %c0_90 = arith.constant 0 : index
    %c0_91 = arith.constant 0 : index
    %458 = vector.load %arg5[%c0_90, %c0_91] : memref<4x1xf32, #tpu.memory_space<vmem>>, vector<4x1xf32>
    %459 = vector.broadcast %458 : vector<4x1xf32> to vector<4x256xf32>
    %460 = arith.addf %457, %459 : vector<4x256xf32>
    %461 = arith.addf %1, %460 : vector<4x256xf32>
    %c0_92 = arith.constant 0 : index
    %c0_93 = arith.constant 0 : index
    %c0_94 = arith.constant 0 : index
    %462 = vector.load %arg6[%c0_92, %c0_93, %c0_94] : memref<1x4x256xf32, #tpu.memory_space<vmem>>, vector<1x4x256xf32>
    %463 = vector.shape_cast %462 : vector<1x4x256xf32> to vector<4x256xf32>
    %464 = vector.shape_cast %461 : vector<4x256xf32> to vector<1x4x256xf32>
    tpu.vector_store %arg6[%c0_92, %c0_93, %c0_94], %464 {strides = array<i32>} : memref<1x4x256xf32, #tpu.memory_space<vmem>>, vector<1x4x256xf32>,
    return
  }
  func.func @transform_0(%arg0: i32) -> (i32, i32, i32) {
    %c0_i32 = arith.constant 0 : i32
    %c0_i32_0 = arith.constant 0 : i32
    %c0_i32_1 = arith.constant 0 : i32
    return %arg0, %c0_i32, %c0_i32_0 : i32, i32, i32
  }
  func.func @transform_1(%arg0: i32) -> (i32, i32) {
    %c0_i32 = arith.constant 0 : i32
    %c0_i32_0 = arith.constant 0 : i32
    %c0_i32_1 = arith.constant 0 : i32
    return %c0_i32, %c0_i32_0 : i32, i32
  }
  func.func @transform_2(%arg0: i32) -> (i32, i32) {
    %c0_i32 = arith.constant 0 : i32
    %c0_i32_0 = arith.constant 0 : i32
    %c0_i32_1 = arith.constant 0 : i32
    return %c0_i32, %c0_i32_0 : i32, i32
  }
  func.func @transform_3(%arg0: i32) -> (i32, i32) {
    %c0_i32 = arith.constant 0 : i32
    %c0_i32_0 = arith.constant 0 : i32
    %c0_i32_1 = arith.constant 0 : i32
    return %c0_i32, %c0_i32_0 : i32, i32
  }
  func.func @transform_4(%arg0: i32) -> (i32, i32) {
    %c0_i32 = arith.constant 0 : i32
    %c0_i32_0 = arith.constant 0 : i32
    %c0_i32_1 = arith.constant 0 : i32
    return %c0_i32, %c0_i32_0 : i32, i32
  }
  func.func @transform_5(%arg0: i32) -> (i32, i32, i32) {
    %c0_i32 = arith.constant 0 : i32
    %c0_i32_0 = arith.constant 0 : i32
    %c0_i32_1 = arith.constant 0 : i32
    return %arg0, %c0_i32, %c0_i32_0 : i32, i32, i32
  }
}

</mosaic_0001>

<llo_original>
// kernel: tpu_custom_call.1
$region0: #{tpu_custom_call.1}
  #allocation0 [shape = 'u32[]', space=smem, size = 0x4, offset = 0x4, fixed_abs, tag = 'smem constant byte address 0x4 - core index']
  #allocation1 [shape = 'u32[144,128]{1,0:T(1,128)}', space=vmem, size = 0x12000, scoped, tag = 'internal scratch']
  %s0 = inlined_call_operand.hbm [shape: f32[2,4,256], index: 0, kind: input, shape index: {}]
  %s1 = inlined_call_operand.vmem [shape: f32[4,36], index: 1, kind: input, shape index: {}]
  %s2 = inlined_call_operand.vmem [shape: f32[4,1], index: 2, kind: input, shape index: {}]
  %s3 = inlined_call_operand.vmem [shape: f32[4,4], index: 3, kind: input, shape index: {}]
  %s4 = inlined_call_operand.vmem [shape: f32[4,1], index: 4, kind: input, shape index: {}]
  %s5 = inlined_call_operand.hbm [shape: f32[2,4,256], index: 5, kind: output, shape index: {}]
  %s6 = sld [smem:[#allocation0]]
  $region57: #{tpu_custom_call.1} parent=0
    _
  %s8 = ssub.s32 1, %s6
  %s9 = scalar_select 0, %s8, %s6
  $region1: #{tpu_custom_call.1} parent=0
    #allocation2 [shape = 'u8[8192]{0}', space=vmem, size = 0x2000, scoped, tag = 'input window, operand 0']
    #allocation3 [shape = 's32[2]{0}', space=sflag, size = 0x8, scoped, tag = 'scoped memory for tpu_custom_call.1']
    #allocation4 [shape = 's32[2]{0}', space=sflag, size = 0x8, scoped, tag = 'scoped memory for tpu_custom_call.1']
    #allocation5 [shape = 'u8[8192]{0}', space=vmem, size = 0x2000, scoped, tag = 'output window, operand 0']
    %10 = vsyncpa [#allocation3], 0
    %s11 = scalar_lea.sflag [#allocation3], 1
    %12 = vsyncpa %s11, 0
    %13 = vsyncpa [#allocation4], 0
    %s14 = scalar_lea.sflag [#allocation4], 1
    %15 = vsyncpa %s14, 0
    loop: start=0, step=1, limit=4
    $region2: #{tpu_custom_call.1} parent=1 // loop_pre_header
      _
    $region3: #{tpu_custom_call.1} parent=1 // loop_header
      %s17 = sphi 0, %s21
      %p18 = scmp.ge.s32.totalorder %s17, 4
      %s27 = sphi 0, %s29
      %s30 = sphi 0, %s27
      %s31 = sphi 0, %s30
      %s47 = sphi 0, %s31
      %s51 = sphi 0, %s51
      %s53 = sphi 0, %s51
      %s54 = sphi 0, %s53
      %s68 = sphi 0, %s54
      %s72 = sphi 0, %s72
      %s74 = sphi 0, %s72
      %s75 = sphi 0, %s74
      %s89 = sphi 0, %s75
      %s93 = sphi 0, %s93
      %s95 = sphi 0, %s93
      %s96 = sphi 0, %s95
      %s110 = sphi 0, %s96
      %s114 = sphi 0, %s114
      %s116 = sphi 0, %s114
      %s117 = sphi 0, %s116
      %s131 = sphi 0, %s117
      %s137 = sphi 0, %s139
      %s140 = sphi 0, %s137
      %s141 = sphi 0, %s140
      %s157 = sphi 0, %s141
    $region4: #{tpu_custom_call.1} parent=1 // loop_header_branch
      %20 = sbr.rel (%p18) target = $region8
    $region5: #{tpu_custom_call.1} parent=1 // loop_body
      %s22 = ssub.s32 %s17, 1
      %s23 = ssub.s32 %s17, 2
      %s24 = sadd.s32 %s17, 1
      %s25 = ssub.s32 %s17, %s24
      %p26 = scmp.eq.s32.totalorder %s25, 0
      %s28 = sadd.s32 %s27, 1
      %s29 = scalar_select %p26, %s27, %s28
      %p32 = pneg %p26
      %p33 = scmp.eq.s32.totalorder %s17, 1
      %p34 = por %p32, %p33
      %p35 = scmp.ne.s32.totalorder %s27, %s30
      %p36 = scmp.eq.s32.totalorder %s17, 0
      %p37 = por %p35, %p36
      %p38 = scmp.ne.s32.totalorder %s27, %s30
      %p39 = scmp.eq.s32.totalorder %s22, 1
      %p40 = por %p38, %p39
      %p41 = scmp.ne.s32.totalorder %s30, %s31
      %p42 = scmp.eq.s32.totalorder %s22, 0
      %p43 = por %p41, %p42
      %p44 = scmp.ne.s32.totalorder %s30, %s31
      %p45 = scmp.eq.s32.totalorder %s23, 1
      %p46 = por %p44, %p45
      %p48 = scmp.ne.s32.totalorder %s31, %s47
      %p49 = scmp.eq.s32.totalorder %s23, 0
      %p50 = por %p48, %p49
      %s52 = sadd.s32 %s51, 1
      %p55 = scmp.eq.s32.totalorder %s17, 1
      %p56 = scmp.ne.s32.totalorder %s51, %s53
      %p57 = scmp.eq.s32.totalorder %s17, 0
      %p58 = por %p56, %p57
      %p59 = scmp.ne.s32.totalorder %s51, %s53
      %p60 = scmp.eq.s32.totalorder %s22, 1
      %p61 = por %p59, %p60
      %p62 = scmp.ne.s32.totalorder %s53, %s54
      %p63 = scmp.eq.s32.totalorder %s22, 0
      %p64 = por %p62, %p63
      %p65 = scmp.ne.s32.totalorder %s53, %s54
      %p66 = scmp.eq.s32.totalorder %s23, 1
      %p67 = por %p65, %p66
      %p69 = scmp.ne.s32.totalorder %s54, %s68
      %p70 = scmp.eq.s32.totalorder %s23, 0
      %p71 = por %p69, %p70
      %s73 = sadd.s32 %s72, 1
      %p76 = scmp.eq.s32.totalorder %s17, 1
      %p77 = scmp.ne.s32.totalorder %s72, %s74
      %p78 = scmp.eq.s32.totalorder %s17, 0
      %p79 = por %p77, %p78
      %p80 = scmp.ne.s32.totalorder %s72, %s74
      %p81 = scmp.eq.s32.totalorder %s22, 1
      %p82 = por %p80, %p81
      %p83 = scmp.ne.s32.totalorder %s74, %s75
      %p84 = scmp.eq.s32.totalorder %s22, 0
      %p85 = por %p83, %p84
      %p86 = scmp.ne.s32.totalorder %s74, %s75
      %p87 = scmp.eq.s32.totalorder %s23, 1
      %p88 = por %p86, %p87
      %p90 = scmp.ne.s32.totalorder %s75, %s89
      %p91 = scmp.eq.s32.totalorder %s23, 0
      %p92 = por %p90, %p91
      %s94 = sadd.s32 %s93, 1
      %p97 = scmp.eq.s32.totalorder %s17, 1
      %p98 = scmp.ne.s32.totalorder %s93, %s95
      %p99 = scmp.eq.s32.totalorder %s17, 0
      %p100 = por %p98, %p99
      %p101 = scmp.ne.s32.totalorder %s93, %s95
      %p102 = scmp.eq.s32.totalorder %s22, 1
      %p103 = por %p101, %p102
      %p104 = scmp.ne.s32.totalorder %s95, %s96
      %p105 = scmp.eq.s32.totalorder %s22, 0
      %p106 = por %p104, %p105
      %p107 = scmp.ne.s32.totalorder %s95, %s96
      %p108 = scmp.eq.s32.totalorder %s23, 1
      %p109 = por %p107, %p108
      %p111 = scmp.ne.s32.totalorder %s96, %s110
      %p112 = scmp.eq.s32.totalorder %s23, 0
      %p113 = por %p111, %p112
      %s115 = sadd.s32 %s114, 1
      %p118 = scmp.eq.s32.totalorder %s17, 1
      %p119 = scmp.ne.s32.totalorder %s114, %s116
      %p120 = scmp.eq.s32.totalorder %s17, 0
      %p121 = por %p119, %p120
      %p122 = scmp.ne.s32.totalorder %s114, %s116
      %p123 = scmp.eq.s32.totalorder %s22, 1
      %p124 = por %p122, %p123
      %p125 = scmp.ne.s32.totalorder %s116, %s117
      %p126 = scmp.eq.s32.totalorder %s22, 0
      %p127 = por %p125, %p126
      %p128 = scmp.ne.s32.totalorder %s116, %s117
      %p129 = scmp.eq.s32.totalorder %s23, 1
      %p130 = por %p128, %p129
      %p132 = scmp.ne.s32.totalorder %s117, %s131
      %p133 = scmp.eq.s32.totalorder %s23, 0
      %p134 = por %p132, %p133
      %s135 = ssub.s32 %s17, %s24
      %p136 = scmp.eq.s32.totalorder %s135, 0
      %s138 = sadd.s32 %s137, 1
      %s139 = scalar_select %p136, %s137, %s138
      %p142 = pneg %p136
      %p143 = scmp.eq.s32.totalorder %s17, 1
      %p144 = por %p142, %p143
      %p145 = scmp.ne.s32.totalorder %s137, %s140
      %p146 = scmp.eq.s32.totalorder %s17, 0
      %p147 = por %p145, %p146
      %p148 = scmp.ne.s32.totalorder %s137, %s140
      %p149 = scmp.eq.s32.totalorder %s22, 1
      %p150 = por %p148, %p149
      %p151 = scmp.ne.s32.totalorder %s140, %s141
      %p152 = scmp.eq.s32.totalorder %s22, 0
      %p153 = por %p151, %p152
      %p154 = scmp.ne.s32.totalorder %s140, %s141
      %p155 = scmp.eq.s32.totalorder %s23, 1
      %p156 = por %p154, %p155
      %p158 = scmp.ne.s32.totalorder %s141, %s157
      %p159 = scmp.eq.s32.totalorder %s23, 0
      %p160 = por %p158, %p159
      %p161 = scmp.le.s32.totalorder 1, %s17
      %p162 = scmp.lt.s32.totalorder %s17, 3
      %p163 = pnand %p161, %p162
      %p164 = pneg %p163
      // Predicated region
      $region9: #{tpu_custom_call.1} parent=5 // pred_check
        _
      $region10: #{tpu_custom_call.1} parent=5 // pred_check_branch
        %166 = sbr.rel (%p163) target = $region12
      $region11: #{tpu_custom_call.1} parent=5 // pred_region
        %s167 = ssub.s32 %s17, 1
        // Predicated region
        $region13: #{tpu_custom_call.1} parent=11 // pred_check
          %p168 = pneg %p64
        $region14: #{tpu_custom_call.1} parent=11 // pred_check_branch
          %170 = sbr.rel (%p168) target = $region16
        $region15: #{tpu_custom_call.1} parent=11 // pred_region
          _
        $region16: #{tpu_custom_call.1} parent=11 // pred_fallthru
          _
        // Predicated region
        $region17: #{tpu_custom_call.1} parent=11 // pred_check
          %p171 = pneg %p85
        $region18: #{tpu_custom_call.1} parent=11 // pred_check_branch
          %173 = sbr.rel (%p171) target = $region20
        $region19: #{tpu_custom_call.1} parent=11 // pred_region
          _
        $region20: #{tpu_custom_call.1} parent=11 // pred_fallthru
          _
        // Predicated region
        $region21: #{tpu_custom_call.1} parent=11 // pred_check
          %p174 = pneg %p106
        $region22: #{tpu_custom_call.1} parent=11 // pred_check_branch
          %176 = sbr.rel (%p174) target = $region24
        $region23: #{tpu_custom_call.1} parent=11 // pred_region
          _
        $region24: #{tpu_custom_call.1} parent=11 // pred_fallthru
          _
        // Predicated region
        $region25: #{tpu_custom_call.1} parent=11 // pred_check
          %p177 = pneg %p127
        $region26: #{tpu_custom_call.1} parent=11 // pred_check_branch
          %179 = sbr.rel (%p177) target = $region28
        $region27: #{tpu_custom_call.1} parent=11 // pred_region
          _
        $region28: #{tpu_custom_call.1} parent=11 // pred_fallthru
          _
      $region12: #{tpu_custom_call.1} parent=5 // pred_fallthru
        _
      %p180 = scmp.lt.s32.totalorder %s17, 2
      // Predicated region
      $region29: #{tpu_custom_call.1} parent=5 // pred_check
        %p181 = pneg %p180
      $region30: #{tpu_custom_call.1} parent=5 // pred_check_branch
        %183 = sbr.rel (%p181) target = $region32
      $region31: #{tpu_custom_call.1} parent=5 // pred_region
        // Predicated region
        $region33: #{tpu_custom_call.1} parent=31 // pred_check
          %p184 = pneg %p37
        $region34: #{tpu_custom_call.1} parent=31 // pred_check_branch
          %186 = sbr.rel (%p184) target = $region36
        $region35: #{tpu_custom_call.1} parent=31 // pred_region
          %s187 = sand.u32 %s27, 1
          %s188 = scalar_lea.sflag [#allocation3], %s187
          %s189 = sand.u32 %s27, 1
          %s190 = smul.addr %s189, 8
          %s191 = scalar_lea.vmem [#allocation2], %s190
          %s193 = ssub.s32 128, 128
          %194 = vsyncadd %s188, %s193
          %s195 = smul.addr %s17, 2
          %s196 = smul.addr %s195, 64
          %s197 = scalar_lea.hbm %s0, %s196
          %s199 = sshll.u32 %s191, 4
          %s200 = int_to_ptr.vmem [resolvable:$true] %s199
          %202 = dma.hbm_to_vmem [thread:$0]  %s197, 128, %s200, %s188
        $region36: #{tpu_custom_call.1} parent=31 // pred_fallthru
          _
      $region32: #{tpu_custom_call.1} parent=5 // pred_fallthru
        _
      %p203 = scmp.le.s32.totalorder 1, %s17
      %p204 = scmp.lt.s32.totalorder %s17, 3
      %p205 = pnand %p203, %p204
      %p206 = pneg %p205
      // Predicated region
      $region37: #{tpu_custom_call.1} parent=5 // pred_check
        _
      $region38: #{tpu_custom_call.1} parent=5 // pred_check_branch
        %208 = sbr.rel (%p205) target = $region40
      $region39: #{tpu_custom_call.1} parent=5 // pred_region
        %s209 = ssub.s32 %s17, 1
        %s210 = sand.u32 %s30, 1
        %s211 = scalar_lea.sflag [#allocation3], %s210
        %s212 = sand.u32 %s30, 1
        %s213 = smul.addr %s212, 8
        %s214 = scalar_lea.vmem [#allocation2], %s213
        // Predicated region
        $region41: #{tpu_custom_call.1} parent=39 // pred_check
          %p215 = pneg %p43
        $region42: #{tpu_custom_call.1} parent=39 // pred_check_branch
          %217 = sbr.rel (%p215) target = $region44
        $region43: #{tpu_custom_call.1} parent=39 // pred_region
          %218 = dma.done %s211, 128
        $region44: #{tpu_custom_call.1} parent=39 // pred_fallthru
          _
        %s219 = sand.u32 %s30, 1
        %s220 = scalar_lea.sflag [#allocation3], %s219
        %s221 = sand.u32 %s30, 1
        %s222 = smul.addr %s221, 8
        %s223 = scalar_lea.vmem [#allocation2], %s222
        %p224 = pneg %p43
        %p225 = pneg %p40
        %p226 = pneg %p64
        %p227 = pneg %p61
        %p228 = pneg %p85
        %p229 = pneg %p82
        %p230 = pneg %p106
        %p231 = pneg %p103
        %p232 = pneg %p127
        %p233 = pneg %p124
        %p234 = pneg %p153
        %p235 = pneg %p150
        %s236 = sand.u32 %s140, 1
        %s237 = scalar_lea.sflag [#allocation4], %s236
        %s238 = sand.u32 %s140, 1
        %s239 = smul.addr %s238, 8
        %s240 = scalar_lea.vmem [#allocation5], %s239
        %v241 = vld [vmem:[%s214] sm:$0xff]
        %v242 = vmax.f32 %v241, 0.0
        %v243 = vlaneseq
        %v244 = vand.u32 %v243, 127
        %v245 = vadd.s32 %v244, 128
        %v246 = vshra.s32 %v244, 4
        %v247 = vshra.s32 %v245, 4
        %v248 = vand.u32 %v244, 15
        %v249 = vand.u32 %v245, 15
        %v250 = vld [vmem:[%s1] sm:$0xf]
        %v251 = vld [vmem:[%s3] sm:$0xf]
        %v253 = vcombine.high %v242, %v242
        %255 = vrot.lane.b32.xlu0 %v242, 17
        %v256 = vpop.permute.xlu0 %255
        %257 = vrot.lane.b32.xlu0 %v253, 17
        %v258 = vpop.permute.xlu0 %257
        %vm259 = vcmp.lt.s32.totalorder %v244, 17
        %v260 = vsel %vm259, %v256, %v258
        %v261 = vsel %vm259, %v258, %v256
        %v262 = vadd.s32 %v246, 4294967295
        %v263 = vadd.s32 %v247, 4294967295
        %vm264 = vcmp.ge.s32.totalorder %v262, 0
        %vm265 = vcmp.ge.s32.totalorder %v263, 0
        %vm266 = vcmp.lt.s32.totalorder %v262, 16
        %vm267 = vcmp.lt.s32.totalorder %v263, 16
        %vm268 = vmand %vm264, %vm266
        %vm269 = vmand %vm265, %vm267
        %v270 = vadd.s32 %v248, 4294967295
        %v271 = vadd.s32 %v249, 4294967295
        %vm272 = vcmp.ge.s32.totalorder %v270, 0
        %vm273 = vcmp.ge.s32.totalorder %v271, 0
        %vm274 = vmand %vm268, %vm272
        %vm275 = vmand %vm269, %vm273
        %vm276 = vcmp.lt.s32.totalorder %v270, 16
        %vm277 = vcmp.lt.s32.totalorder %v271, 16
        %vm278 = vmand %vm274, %vm276
        %vm279 = vmand %vm275, %vm277
        %v280 = vsel %vm278, 1.0, 0.0
        %v281 = vsel %vm279, 1.0, 0.0
        %v282 = vmul.f32 %v261, %v280
        %v283 = vmul.f32 %v260, %v281
        %285 = vset.pattern.permute.xlu0 0
        %286 = vperm.xlu0 %285, %v250
        %v287 = vpop.permute.xlu0 %286
        %v289 = vlaneseq
        %v290 = vshrl.u32 %v289, 7
        %v291 = vsub.s32 0, %v290
        %v292 = vrot.slane %v282, %v291
        %v293 = vlaneseq
        %v294 = vshrl.u32 %v293, 7
        %v295 = vsub.s32 0, %v294
        %v296 = vrot.slane %v283, %v295
        %v297 = vmul.f32 %v287, %v292
        %v298 = vmul.f32 %v287, %v296
        %v299 = vadd.f32 %v297, 0.0
        %v300 = vadd.f32 %v298, 0.0
        %301 = vset.pattern.permute.xlu0 1
        %302 = vperm.xlu0 %301, %v250
        %v303 = vpop.permute.xlu0 %302
        %v305 = vlaneseq
        %v306 = vshrl.u32 %v305, 7
        %v307 = vsub.s32 1, %v306
        %v308 = vrot.slane %v282, %v307
        %v309 = vlaneseq
        %v310 = vshrl.u32 %v309, 7
        %v311 = vsub.s32 1, %v310
        %v312 = vrot.slane %v283, %v311
        %v313 = vmul.f32 %v303, %v308
        %v314 = vmul.f32 %v303, %v312
        %v315 = vadd.f32 %v299, %v313
        %v316 = vadd.f32 %v300, %v314
        %317 = vset.pattern.permute.xlu0 2
        %318 = vperm.xlu0 %317, %v250
        %v319 = vpop.permute.xlu0 %318
        %v321 = vlaneseq
        %v322 = vshrl.u32 %v321, 7
        %v323 = vsub.s32 2, %v322
        %v324 = vrot.slane %v282, %v323
        %v325 = vlaneseq
        %v326 = vshrl.u32 %v325, 7
        %v327 = vsub.s32 2, %v326
        %v328 = vrot.slane %v283, %v327
        %v329 = vmul.f32 %v319, %v324
        %v330 = vmul.f32 %v319, %v328
        %v331 = vadd.f32 %v315, %v329
        %v332 = vadd.f32 %v316, %v330
        %333 = vset.pattern.permute.xlu0 3
        %334 = vperm.xlu0 %333, %v250
        %v335 = vpop.permute.xlu0 %334
        %v337 = vlaneseq
        %v338 = vshrl.u32 %v337, 7
        %v339 = vsub.s32 3, %v338
        %v340 = vrot.slane %v282, %v339
        %v341 = vlaneseq
        %v342 = vshrl.u32 %v341, 7
        %v343 = vsub.s32 3, %v342
        %v344 = vrot.slane %v283, %v343
        %v345 = vmul.f32 %v335, %v340
        %v346 = vmul.f32 %v335, %v344
        %v347 = vadd.f32 %v331, %v345
        %v348 = vadd.f32 %v332, %v346
        %349 = vrot.lane.b32.xlu0 %v242, 16
        %v350 = vpop.permute.xlu0 %349
        %351 = vrot.lane.b32.xlu0 %v253, 16
        %v352 = vpop.permute.xlu0 %351
        %vm353 = vcmp.lt.s32.totalorder %v244, 16
        %v354 = vsel %vm353, %v350, %v352
        %v355 = vsel %vm353, %v352, %v350
        %vm356 = vcmp.ge.s32.totalorder %v248, 0
        %vm357 = vcmp.ge.s32.totalorder %v249, 0
        %vm358 = vmand %vm268, %vm356
        %vm359 = vmand %vm269, %vm357
        %vm360 = vcmp.lt.s32.totalorder %v248, 16
        %vm361 = vcmp.lt.s32.totalorder %v249, 16
        %vm362 = vmand %vm358, %vm360
        %vm363 = vmand %vm359, %vm361
        %v364 = vsel %vm362, 1.0, 0.0
        %v365 = vsel %vm363, 1.0, 0.0
        %v366 = vmul.f32 %v355, %v364
        %v367 = vmul.f32 %v354, %v365
        %368 = vset.pattern.permute.xlu0 4
        %369 = vperm.xlu0 %368, %v250
        %v370 = vpop.permute.xlu0 %369
        %v372 = vlaneseq
        %v373 = vshrl.u32 %v372, 7
        %v374 = vsub.s32 0, %v373
        %v375 = vrot.slane %v366, %v374
        %v376 = vlaneseq
        %v377 = vshrl.u32 %v376, 7
        %v378 = vsub.s32 0, %v377
        %v379 = vrot.slane %v367, %v378
        %v380 = vmul.f32 %v370, %v375
        %v381 = vmul.f32 %v370, %v379
        %v382 = vadd.f32 %v347, %v380
        %v383 = vadd.f32 %v348, %v381
        %384 = vset.pattern.permute.xlu0 5
        %385 = vperm.xlu0 %384, %v250
        %v386 = vpop.permute.xlu0 %385
        %v388 = vlaneseq
        %v389 = vshrl.u32 %v388, 7
        %v390 = vsub.s32 1, %v389
        %v391 = vrot.slane %v366, %v390
        %v392 = vlaneseq
        %v393 = vshrl.u32 %v392, 7
        %v394 = vsub.s32 1, %v393
        %v395 = vrot.slane %v367, %v394
        %v396 = vmul.f32 %v386, %v391
        %v397 = vmul.f32 %v386, %v395
        %v398 = vadd.f32 %v382, %v396
        %v399 = vadd.f32 %v383, %v397
        %400 = vset.pattern.permute.xlu0 6
        %401 = vperm.xlu0 %400, %v250
        %v402 = vpop.permute.xlu0 %401
        %v404 = vlaneseq
        %v405 = vshrl.u32 %v404, 7
        %v406 = vsub.s32 2, %v405
        %v407 = vrot.slane %v366, %v406
        %v408 = vlaneseq
        %v409 = vshrl.u32 %v408, 7
        %v410 = vsub.s32 2, %v409
        %v411 = vrot.slane %v367, %v410
        %v412 = vmul.f32 %v402, %v407
        %v413 = vmul.f32 %v402, %v411
        %v414 = vadd.f32 %v398, %v412
        %v415 = vadd.f32 %v399, %v413
        %416 = vset.pattern.permute.xlu0 7
        %417 = vperm.xlu0 %416, %v250
        %v418 = vpop.permute.xlu0 %417
        %v420 = vlaneseq
        %v421 = vshrl.u32 %v420, 7
        %v422 = vsub.s32 3, %v421
        %v423 = vrot.slane %v366, %v422
        %v424 = vlaneseq
        %v425 = vshrl.u32 %v424, 7
        %v426 = vsub.s32 3, %v425
        %v427 = vrot.slane %v367, %v426
        %v428 = vmul.f32 %v418, %v423
        %v429 = vmul.f32 %v418, %v427
        %v430 = vadd.f32 %v414, %v428
        %v431 = vadd.f32 %v415, %v429
        %432 = vrot.lane.b32.xlu0 %v242, 15
        %v433 = vpop.permute.xlu0 %432
        %434 = vrot.lane.b32.xlu0 %v253, 15
        %v435 = vpop.permute.xlu0 %434
        %vm436 = vcmp.lt.s32.totalorder %v244, 15
        %v437 = vsel %vm436, %v433, %v435
        %v438 = vsel %vm436, %v435, %v433
        %v439 = vadd.s32 %v248, 1
        %v440 = vadd.s32 %v249, 1
        %vm441 = vcmp.ge.s32.totalorder %v439, 0
        %vm442 = vcmp.ge.s32.totalorder %v440, 0
        %vm443 = vmand %vm268, %vm441
        %vm444 = vmand %vm269, %vm442
        %vm445 = vcmp.lt.s32.totalorder %v439, 16
        %vm446 = vcmp.lt.s32.totalorder %v440, 16
        %vm447 = vmand %vm443, %vm445
        %vm448 = vmand %vm444, %vm446
        %v449 = vsel %vm447, 1.0, 0.0
        %v450 = vsel %vm448, 1.0, 0.0
        %v451 = vmul.f32 %v438, %v449
        %v452 = vmul.f32 %v437, %v450
        %453 = vset.pattern.permute.xlu0 8
        %454 = vperm.xlu0 %453, %v250
        %v455 = vpop.permute.xlu0 %454
        %v457 = vlaneseq
        %v458 = vshrl.u32 %v457, 7
        %v459 = vsub.s32 0, %v458
        %v460 = vrot.slane %v451, %v459
        %v461 = vlaneseq
        %v462 = vshrl.u32 %v461, 7
        %v463 = vsub.s32 0, %v462
        %v464 = vrot.slane %v452, %v463
        %v465 = vmul.f32 %v455, %v460
        %v466 = vmul.f32 %v455, %v464
        %v467 = vadd.f32 %v430, %v465
        %v468 = vadd.f32 %v431, %v466
        %469 = vset.pattern.permute.xlu0 9
        %470 = vperm.xlu0 %469, %v250
        %v471 = vpop.permute.xlu0 %470
        %v473 = vlaneseq
        %v474 = vshrl.u32 %v473, 7
        %v475 = vsub.s32 1, %v474
        %v476 = vrot.slane %v451, %v475
        %v477 = vlaneseq
        %v478 = vshrl.u32 %v477, 7
        %v479 = vsub.s32 1, %v478
        %v480 = vrot.slane %v452, %v479
        %v481 = vmul.f32 %v471, %v476
        %v482 = vmul.f32 %v471, %v480
        %v483 = vadd.f32 %v467, %v481
        %v484 = vadd.f32 %v468, %v482
        %485 = vset.pattern.permute.xlu0 10
        %486 = vperm.xlu0 %485, %v250
        %v487 = vpop.permute.xlu0 %486
        %v489 = vlaneseq
        %v490 = vshrl.u32 %v489, 7
        %v491 = vsub.s32 2, %v490
        %v492 = vrot.slane %v451, %v491
        %v493 = vlaneseq
        %v494 = vshrl.u32 %v493, 7
        %v495 = vsub.s32 2, %v494
        %v496 = vrot.slane %v452, %v495
        %v497 = vmul.f32 %v487, %v492
        %v498 = vmul.f32 %v487, %v496
        %v499 = vadd.f32 %v483, %v497
        %v500 = vadd.f32 %v484, %v498
        %501 = vset.pattern.permute.xlu0 11
        %502 = vperm.xlu0 %501, %v250
        %v503 = vpop.permute.xlu0 %502
        %v505 = vlaneseq
        %v506 = vshrl.u32 %v505, 7
        %v507 = vsub.s32 3, %v506
        %v508 = vrot.slane %v451, %v507
        %v509 = vlaneseq
        %v510 = vshrl.u32 %v509, 7
        %v511 = vsub.s32 3, %v510
        %v512 = vrot.slane %v452, %v511
        %v513 = vmul.f32 %v503, %v508
        %v514 = vmul.f32 %v503, %v512
        %v515 = vadd.f32 %v499, %v513
        %v516 = vadd.f32 %v500, %v514
        %517 = vrot.lane.b32.xlu0 %v242, 1
        %v518 = vpop.permute.xlu0 %517
        %519 = vrot.lane.b32.xlu0 %v253, 1
        %v520 = vpop.permute.xlu0 %519
        %vm521 = vcmp.lt.s32.totalorder %v244, 1
        %v522 = vsel %vm521, %v518, %v520
        %v523 = vsel %vm521, %v520, %v518
        %vm524 = vcmp.ge.s32.totalorder %v246, 0
        %vm525 = vcmp.ge.s32.totalorder %v247, 0
        %vm526 = vcmp.lt.s32.totalorder %v246, 16
        %vm527 = vcmp.lt.s32.totalorder %v247, 16
        %vm528 = vmand %vm524, %vm526
        %vm529 = vmand %vm525, %vm527
        %vm530 = vmand %vm528, %vm272
        %vm531 = vmand %vm529, %vm273
        %vm532 = vmand %vm530, %vm276
        %vm533 = vmand %vm531, %vm277
        %v534 = vsel %vm532, 1.0, 0.0
        %v535 = vsel %vm533, 1.0, 0.0
        %v536 = vmul.f32 %v523, %v534
        %v537 = vmul.f32 %v522, %v535
        %538 = vset.pattern.permute.xlu0 12
        %539 = vperm.xlu0 %538, %v250
        %v540 = vpop.permute.xlu0 %539
        %v542 = vlaneseq
        %v543 = vshrl.u32 %v542, 7
        %v544 = vsub.s32 0, %v543
        %v545 = vrot.slane %v536, %v544
        %v546 = vlaneseq
        %v547 = vshrl.u32 %v546, 7
        %v548 = vsub.s32 0, %v547
        %v549 = vrot.slane %v537, %v548
        %v550 = vmul.f32 %v540, %v545
        %v551 = vmul.f32 %v540, %v549
        %v552 = vadd.f32 %v515, %v550
        %v553 = vadd.f32 %v516, %v551
        %554 = vset.pattern.permute.xlu0 13
        %555 = vperm.xlu0 %554, %v250
        %v556 = vpop.permute.xlu0 %555
        %v558 = vlaneseq
        %v559 = vshrl.u32 %v558, 7
        %v560 = vsub.s32 1, %v559
        %v561 = vrot.slane %v536, %v560
        %v562 = vlaneseq
        %v563 = vshrl.u32 %v562, 7
        %v564 = vsub.s32 1, %v563
        %v565 = vrot.slane %v537, %v564
        %v566 = vmul.f32 %v556, %v561
        %v567 = vmul.f32 %v556, %v565
        %v568 = vadd.f32 %v552, %v566
        %v569 = vadd.f32 %v553, %v567
        %570 = vset.pattern.permute.xlu0 14
        %571 = vperm.xlu0 %570, %v250
        %v572 = vpop.permute.xlu0 %571
        %v574 = vlaneseq
        %v575 = vshrl.u32 %v574, 7
        %v576 = vsub.s32 2, %v575
        %v577 = vrot.slane %v536, %v576
        %v578 = vlaneseq
        %v579 = vshrl.u32 %v578, 7
        %v580 = vsub.s32 2, %v579
        %v581 = vrot.slane %v537, %v580
        %v582 = vmul.f32 %v572, %v577
        %v583 = vmul.f32 %v572, %v581
        %v584 = vadd.f32 %v568, %v582
        %v585 = vadd.f32 %v569, %v583
        %586 = vset.pattern.permute.xlu0 15
        %587 = vperm.xlu0 %586, %v250
        %v588 = vpop.permute.xlu0 %587
        %v590 = vlaneseq
        %v591 = vshrl.u32 %v590, 7
        %v592 = vsub.s32 3, %v591
        %v593 = vrot.slane %v536, %v592
        %v594 = vlaneseq
        %v595 = vshrl.u32 %v594, 7
        %v596 = vsub.s32 3, %v595
        %v597 = vrot.slane %v537, %v596
        %v598 = vmul.f32 %v588, %v593
        %v599 = vmul.f32 %v588, %v597
        %v600 = vadd.f32 %v584, %v598
        %v601 = vadd.f32 %v585, %v599
        %602 = vset.pattern.permute.xlu0 16
        %603 = vperm.xlu0 %602, %v250
        %v604 = vpop.permute.xlu0 %603
        %v606 = vlaneseq
        %v607 = vshrl.u32 %v606, 7
        %v608 = vsub.s32 0, %v607
        %v609 = vrot.slane %v242, %v608
        %v610 = vlaneseq
        %v611 = vshrl.u32 %v610, 7
        %v612 = vsub.s32 4, %v611
        %v613 = vrot.slane %v242, %v612
        %v616 = vlaneseq
        %v617 = vshrl.u32 %v616, 7
        %v618 = vsub.s32 0, %v617
        %v619 = vrot.slane %v609, %v618
        %v620 = vlaneseq
        %v621 = vshrl.u32 %v620, 7
        %v622 = vsub.s32 0, %v621
        %v623 = vrot.slane %v613, %v622
        %v624 = vmul.f32 %v604, %v619
        %v625 = vmul.f32 %v604, %v623
        %v626 = vadd.f32 %v600, %v624
        %v627 = vadd.f32 %v601, %v625
        %628 = vset.pattern.permute.xlu0 17
        %629 = vperm.xlu0 %628, %v250
        %v630 = vpop.permute.xlu0 %629
        %v632 = vlaneseq
        %v633 = vshrl.u32 %v632, 7
        %v634 = vsub.s32 1, %v633
        %v635 = vrot.slane %v242, %v634
        %v636 = vlaneseq
        %v637 = vshrl.u32 %v636, 7
        %v638 = vsub.s32 5, %v637
        %v639 = vrot.slane %v242, %v638
        %v642 = vlaneseq
        %v643 = vshrl.u32 %v642, 7
        %v644 = vsub.s32 1, %v643
        %v645 = vrot.slane %v635, %v644
        %v646 = vlaneseq
        %v647 = vshrl.u32 %v646, 7
        %v648 = vsub.s32 1, %v647
        %v649 = vrot.slane %v639, %v648
        %v650 = vmul.f32 %v630, %v645
        %v651 = vmul.f32 %v630, %v649
        %v652 = vadd.f32 %v626, %v650
        %v653 = vadd.f32 %v627, %v651
        %654 = vset.pattern.permute.xlu0 18
        %655 = vperm.xlu0 %654, %v250
        %v656 = vpop.permute.xlu0 %655
        %v658 = vlaneseq
        %v659 = vshrl.u32 %v658, 7
        %v660 = vsub.s32 2, %v659
        %v661 = vrot.slane %v242, %v660
        %v662 = vlaneseq
        %v663 = vshrl.u32 %v662, 7
        %v664 = vsub.s32 6, %v663
        %v665 = vrot.slane %v242, %v664
        %v668 = vlaneseq
        %v669 = vshrl.u32 %v668, 7
        %v670 = vsub.s32 2, %v669
        %v671 = vrot.slane %v661, %v670
        %v672 = vlaneseq
        %v673 = vshrl.u32 %v672, 7
        %v674 = vsub.s32 2, %v673
        %v675 = vrot.slane %v665, %v674
        %v676 = vmul.f32 %v656, %v671
        %v677 = vmul.f32 %v656, %v675
        %v678 = vadd.f32 %v652, %v676
        %v679 = vadd.f32 %v653, %v677
        %680 = vset.pattern.permute.xlu0 19
        %681 = vperm.xlu0 %680, %v250
        %v682 = vpop.permute.xlu0 %681
        %v684 = vlaneseq
        %v685 = vshrl.u32 %v684, 7
        %v686 = vsub.s32 3, %v685
        %v687 = vrot.slane %v242, %v686
        %v688 = vlaneseq
        %v689 = vshrl.u32 %v688, 7
        %v690 = vsub.s32 7, %v689
        %v691 = vrot.slane %v242, %v690
        %v694 = vlaneseq
        %v695 = vshrl.u32 %v694, 7
        %v696 = vsub.s32 3, %v695
        %v697 = vrot.slane %v687, %v696
        %v698 = vlaneseq
        %v699 = vshrl.u32 %v698, 7
        %v700 = vsub.s32 3, %v699
        %v701 = vrot.slane %v691, %v700
        %v702 = vmul.f32 %v682, %v697
        %v703 = vmul.f32 %v682, %v701
        %v704 = vadd.f32 %v678, %v702
        %v705 = vadd.f32 %v679, %v703
        %706 = vrot.lane.b32.xlu0 %v242, 127
        %v707 = vpop.permute.xlu0 %706
        %708 = vrot.lane.b32.xlu0 %v253, 127
        %v709 = vpop.permute.xlu0 %708
        %vm710 = vcmp.lt.s32.totalorder %v244, 127
        %v711 = vsel %vm710, %v707, %v709
        %v712 = vsel %vm710, %v709, %v707
        %vm713 = vmand %vm528, %vm441
        %vm714 = vmand %vm529, %vm442
        %vm715 = vmand %vm713, %vm445
        %vm716 = vmand %vm714, %vm446
        %v717 = vsel %vm715, 1.0, 0.0
        %v718 = vsel %vm716, 1.0, 0.0
        %v719 = vmul.f32 %v711, %v717
        %v720 = vmul.f32 %v712, %v718
        %721 = vset.pattern.permute.xlu0 20
        %722 = vperm.xlu0 %721, %v250
        %v723 = vpop.permute.xlu0 %722
        %v725 = vlaneseq
        %v726 = vshrl.u32 %v725, 7
        %v727 = vsub.s32 0, %v726
        %v728 = vrot.slane %v719, %v727
        %v729 = vlaneseq
        %v730 = vshrl.u32 %v729, 7
        %v731 = vsub.s32 0, %v730
        %v732 = vrot.slane %v720, %v731
        %v733 = vmul.f32 %v723, %v728
        %v734 = vmul.f32 %v723, %v732
        %v735 = vadd.f32 %v704, %v733
        %v736 = vadd.f32 %v705, %v734
        %737 = vset.pattern.permute.xlu0 21
        %738 = vperm.xlu0 %737, %v250
        %v739 = vpop.permute.xlu0 %738
        %v741 = vlaneseq
        %v742 = vshrl.u32 %v741, 7
        %v743 = vsub.s32 1, %v742
        %v744 = vrot.slane %v719, %v743
        %v745 = vlaneseq
        %v746 = vshrl.u32 %v745, 7
        %v747 = vsub.s32 1, %v746
        %v748 = vrot.slane %v720, %v747
        %v749 = vmul.f32 %v739, %v744
        %v750 = vmul.f32 %v739, %v748
        %v751 = vadd.f32 %v735, %v749
        %v752 = vadd.f32 %v736, %v750
        %753 = vset.pattern.permute.xlu0 22
        %754 = vperm.xlu0 %753, %v250
        %v755 = vpop.permute.xlu0 %754
        %v757 = vlaneseq
        %v758 = vshrl.u32 %v757, 7
        %v759 = vsub.s32 2, %v758
        %v760 = vrot.slane %v719, %v759
        %v761 = vlaneseq
        %v762 = vshrl.u32 %v761, 7
        %v763 = vsub.s32 2, %v762
        %v764 = vrot.slane %v720, %v763
        %v765 = vmul.f32 %v755, %v760
        %v766 = vmul.f32 %v755, %v764
        %v767 = vadd.f32 %v751, %v765
        %v768 = vadd.f32 %v752, %v766
        %769 = vset.pattern.permute.xlu0 23
        %770 = vperm.xlu0 %769, %v250
        %v771 = vpop.permute.xlu0 %770
        %v773 = vlaneseq
        %v774 = vshrl.u32 %v773, 7
        %v775 = vsub.s32 3, %v774
        %v776 = vrot.slane %v719, %v775
        %v777 = vlaneseq
        %v778 = vshrl.u32 %v777, 7
        %v779 = vsub.s32 3, %v778
        %v780 = vrot.slane %v720, %v779
        %v781 = vmul.f32 %v771, %v776
        %v782 = vmul.f32 %v771, %v780
        %v783 = vadd.f32 %v767, %v781
        %v784 = vadd.f32 %v768, %v782
        %785 = vrot.lane.b32.xlu0 %v242, 113
        %v786 = vpop.permute.xlu0 %785
        %787 = vrot.lane.b32.xlu0 %v253, 113
        %v788 = vpop.permute.xlu0 %787
        %vm789 = vcmp.lt.s32.totalorder %v244, 113
        %v790 = vsel %vm789, %v786, %v788
        %v791 = vsel %vm789, %v788, %v786
        %v792 = vadd.s32 %v246, 1
        %v793 = vadd.s32 %v247, 1
        %vm794 = vcmp.ge.s32.totalorder %v792, 0
        %vm795 = vcmp.ge.s32.totalorder %v793, 0
        %vm796 = vcmp.lt.s32.totalorder %v792, 16
        %vm797 = vcmp.lt.s32.totalorder %v793, 16
        %vm798 = vmand %vm794, %vm796
        %vm799 = vmand %vm795, %vm797
        %vm800 = vmand %vm798, %vm272
        %vm801 = vmand %vm799, %vm273
        %vm802 = vmand %vm800, %vm276
        %vm803 = vmand %vm801, %vm277
        %v804 = vsel %vm802, 1.0, 0.0
        %v805 = vsel %vm803, 1.0, 0.0
        %v806 = vmul.f32 %v790, %v804
        %v807 = vmul.f32 %v791, %v805
        %808 = vset.pattern.permute.xlu0 24
        %809 = vperm.xlu0 %808, %v250
        %v810 = vpop.permute.xlu0 %809
        %v812 = vlaneseq
        %v813 = vshrl.u32 %v812, 7
        %v814 = vsub.s32 0, %v813
        %v815 = vrot.slane %v806, %v814
        %v816 = vlaneseq
        %v817 = vshrl.u32 %v816, 7
        %v818 = vsub.s32 0, %v817
        %v819 = vrot.slane %v807, %v818
        %v820 = vmul.f32 %v810, %v815
        %v821 = vmul.f32 %v810, %v819
        %v822 = vadd.f32 %v783, %v820
        %v823 = vadd.f32 %v784, %v821
        %824 = vset.pattern.permute.xlu0 25
        %825 = vperm.xlu0 %824, %v250
        %v826 = vpop.permute.xlu0 %825
        %v828 = vlaneseq
        %v829 = vshrl.u32 %v828, 7
        %v830 = vsub.s32 1, %v829
        %v831 = vrot.slane %v806, %v830
        %v832 = vlaneseq
        %v833 = vshrl.u32 %v832, 7
        %v834 = vsub.s32 1, %v833
        %v835 = vrot.slane %v807, %v834
        %v836 = vmul.f32 %v826, %v831
        %v837 = vmul.f32 %v826, %v835
        %v838 = vadd.f32 %v822, %v836
        %v839 = vadd.f32 %v823, %v837
        %840 = vset.pattern.permute.xlu0 26
        %841 = vperm.xlu0 %840, %v250
        %v842 = vpop.permute.xlu0 %841
        %v844 = vlaneseq
        %v845 = vshrl.u32 %v844, 7
        %v846 = vsub.s32 2, %v845
        %v847 = vrot.slane %v806, %v846
        %v848 = vlaneseq
        %v849 = vshrl.u32 %v848, 7
        %v850 = vsub.s32 2, %v849
        %v851 = vrot.slane %v807, %v850
        %v852 = vmul.f32 %v842, %v847
        %v853 = vmul.f32 %v842, %v851
        %v854 = vadd.f32 %v838, %v852
        %v855 = vadd.f32 %v839, %v853
        %856 = vset.pattern.permute.xlu0 27
        %857 = vperm.xlu0 %856, %v250
        %v858 = vpop.permute.xlu0 %857
        %v860 = vlaneseq
        %v861 = vshrl.u32 %v860, 7
        %v862 = vsub.s32 3, %v861
        %v863 = vrot.slane %v806, %v862
        %v864 = vlaneseq
        %v865 = vshrl.u32 %v864, 7
        %v866 = vsub.s32 3, %v865
        %v867 = vrot.slane %v807, %v866
        %v868 = vmul.f32 %v858, %v863
        %v869 = vmul.f32 %v858, %v867
        %v870 = vadd.f32 %v854, %v868
        %v871 = vadd.f32 %v855, %v869
        %872 = vrot.lane.b32.xlu0 %v242, 112
        %v873 = vpop.permute.xlu0 %872
        %874 = vrot.lane.b32.xlu0 %v253, 112
        %v875 = vpop.permute.xlu0 %874
        %vm876 = vcmp.lt.s32.totalorder %v244, 112
        %v877 = vsel %vm876, %v873, %v875
        %v878 = vsel %vm876, %v875, %v873
        %vm879 = vmand %vm798, %vm356
        %vm880 = vmand %vm799, %vm357
        %vm881 = vmand %vm879, %vm360
        %vm882 = vmand %vm880, %vm361
        %v883 = vsel %vm881, 1.0, 0.0
        %v884 = vsel %vm882, 1.0, 0.0
        %v885 = vmul.f32 %v877, %v883
        %v886 = vmul.f32 %v878, %v884
        %887 = vset.pattern.permute.xlu0 28
        %888 = vperm.xlu0 %887, %v250
        %v889 = vpop.permute.xlu0 %888
        %v891 = vlaneseq
        %v892 = vshrl.u32 %v891, 7
        %v893 = vsub.s32 0, %v892
        %v894 = vrot.slane %v885, %v893
        %v895 = vlaneseq
        %v896 = vshrl.u32 %v895, 7
        %v897 = vsub.s32 0, %v896
        %v898 = vrot.slane %v886, %v897
        %v899 = vmul.f32 %v889, %v894
        %v900 = vmul.f32 %v889, %v898
        %v901 = vadd.f32 %v870, %v899
        %v902 = vadd.f32 %v871, %v900
        %903 = vset.pattern.permute.xlu0 29
        %904 = vperm.xlu0 %903, %v250
        %v905 = vpop.permute.xlu0 %904
        %v907 = vlaneseq
        %v908 = vshrl.u32 %v907, 7
        %v909 = vsub.s32 1, %v908
        %v910 = vrot.slane %v885, %v909
        %v911 = vlaneseq
        %v912 = vshrl.u32 %v911, 7
        %v913 = vsub.s32 1, %v912
        %v914 = vrot.slane %v886, %v913
        %v915 = vmul.f32 %v905, %v910
        %v916 = vmul.f32 %v905, %v914
        %v917 = vadd.f32 %v901, %v915
        %v918 = vadd.f32 %v902, %v916
        %919 = vset.pattern.permute.xlu0 30
        %920 = vperm.xlu0 %919, %v250
        %v921 = vpop.permute.xlu0 %920
        %v923 = vlaneseq
        %v924 = vshrl.u32 %v923, 7
        %v925 = vsub.s32 2, %v924
        %v926 = vrot.slane %v885, %v925
        %v927 = vlaneseq
        %v928 = vshrl.u32 %v927, 7
        %v929 = vsub.s32 2, %v928
        %v930 = vrot.slane %v886, %v929
        %v931 = vmul.f32 %v921, %v926
        %v932 = vmul.f32 %v921, %v930
        %v933 = vadd.f32 %v917, %v931
        %v934 = vadd.f32 %v918, %v932
        %935 = vset.pattern.permute.xlu0 31
        %936 = vperm.xlu0 %935, %v250
        %v937 = vpop.permute.xlu0 %936
        %v939 = vlaneseq
        %v940 = vshrl.u32 %v939, 7
        %v941 = vsub.s32 3, %v940
        %v942 = vrot.slane %v885, %v941
        %v943 = vlaneseq
        %v944 = vshrl.u32 %v943, 7
        %v945 = vsub.s32 3, %v944
        %v946 = vrot.slane %v886, %v945
        %v947 = vmul.f32 %v937, %v942
        %v948 = vmul.f32 %v937, %v946
        %v949 = vadd.f32 %v933, %v947
        %v950 = vadd.f32 %v934, %v948
        %951 = vrot.lane.b32.xlu0 %v242, 111
        %v952 = vpop.permute.xlu0 %951
        %953 = vrot.lane.b32.xlu0 %v253, 111
        %v954 = vpop.permute.xlu0 %953
        %vm955 = vcmp.lt.s32.totalorder %v244, 111
        %v956 = vsel %vm955, %v952, %v954
        %v957 = vsel %vm955, %v954, %v952
        %vm958 = vmand %vm798, %vm441
        %vm959 = vmand %vm799, %vm442
        %vm960 = vmand %vm958, %vm445
        %vm961 = vmand %vm959, %vm446
        %v962 = vsel %vm960, 1.0, 0.0
        %v963 = vsel %vm961, 1.0, 0.0
        %v964 = vmul.f32 %v956, %v962
        %v965 = vmul.f32 %v957, %v963
        %966 = vset.pattern.permute.xlu0 32
        %967 = vperm.xlu0 %966, %v250
        %v968 = vpop.permute.xlu0 %967
        %v970 = vlaneseq
        %v971 = vshrl.u32 %v970, 7
        %v972 = vsub.s32 0, %v971
        %v973 = vrot.slane %v964, %v972
        %v974 = vlaneseq
        %v975 = vshrl.u32 %v974, 7
        %v976 = vsub.s32 0, %v975
        %v977 = vrot.slane %v965, %v976
        %v978 = vmul.f32 %v968, %v973
        %v979 = vmul.f32 %v968, %v977
        %v980 = vadd.f32 %v949, %v978
        %v981 = vadd.f32 %v950, %v979
        %982 = vset.pattern.permute.xlu0 33
        %983 = vperm.xlu0 %982, %v250
        %v984 = vpop.permute.xlu0 %983
        %v986 = vlaneseq
        %v987 = vshrl.u32 %v986, 7
        %v988 = vsub.s32 1, %v987
        %v989 = vrot.slane %v964, %v988
        %v990 = vlaneseq
        %v991 = vshrl.u32 %v990, 7
        %v992 = vsub.s32 1, %v991
        %v993 = vrot.slane %v965, %v992
        %v994 = vmul.f32 %v984, %v989
        %v995 = vmul.f32 %v984, %v993
        %v996 = vadd.f32 %v980, %v994
        %v997 = vadd.f32 %v981, %v995
        %998 = vset.pattern.permute.xlu0 34
        %999 = vperm.xlu0 %998, %v250
        %v1000 = vpop.permute.xlu0 %999
        %v1002 = vlaneseq
        %v1003 = vshrl.u32 %v1002, 7
        %v1004 = vsub.s32 2, %v1003
        %v1005 = vrot.slane %v964, %v1004
        %v1006 = vlaneseq
        %v1007 = vshrl.u32 %v1006, 7
        %v1008 = vsub.s32 2, %v1007
        %v1009 = vrot.slane %v965, %v1008
        %v1010 = vmul.f32 %v1000, %v1005
        %v1011 = vmul.f32 %v1000, %v1009
        %v1012 = vadd.f32 %v996, %v1010
        %v1013 = vadd.f32 %v997, %v1011
        %1014 = vset.pattern.permute.xlu0 35
        %1015 = vperm.xlu0 %1014, %v250
        %v1016 = vpop.permute.xlu0 %1015
        %v1018 = vlaneseq
        %v1019 = vshrl.u32 %v1018, 7
        %v1020 = vsub.s32 3, %v1019
        %v1021 = vrot.slane %v964, %v1020
        %v1022 = vlaneseq
        %v1023 = vshrl.u32 %v1022, 7
        %v1024 = vsub.s32 3, %v1023
        %v1025 = vrot.slane %v965, %v1024
        %v1026 = vmul.f32 %v1016, %v1021
        %v1027 = vmul.f32 %v1016, %v1025
        %v1028 = vadd.f32 %v1012, %v1026
        %v1029 = vadd.f32 %v1013, %v1027
        %v1030 = vld [vmem:[%s2] sm:$0xf]
        %1032 = vset.pattern.permute.xlu0 0
        %1033 = vperm.xlu0 %1032, %v1030
        %v1034 = vpop.permute.xlu0 %1033
        %v1036 = vadd.f32 %v1028, %v1034
        %v1037 = vadd.f32 %v1029, %v1034
        %v1038 = vmax.f32 %v1036, 0.0
        %v1039 = vmax.f32 %v1037, 0.0
        %1041 = vset.pattern.permute.xlu0 0
        %1042 = vperm.xlu0 %1041, %v251
        %v1043 = vpop.permute.xlu0 %1042
        %v1045 = vlaneseq
        %v1046 = vshrl.u32 %v1045, 7
        %v1047 = vsub.s32 0, %v1046
        %v1048 = vrot.slane %v1038, %v1047
        %v1049 = vlaneseq
        %v1050 = vshrl.u32 %v1049, 7
        %v1051 = vsub.s32 0, %v1050
        %v1052 = vrot.slane %v1039, %v1051
        %v1053 = vmul.f32 %v1043, %v1048
        %v1054 = vmul.f32 %v1043, %v1052
        %v1055 = vadd.f32 %v1053, 0.0
        %v1056 = vadd.f32 %v1054, 0.0
        %1057 = vset.pattern.permute.xlu0 1
        %1058 = vperm.xlu0 %1057, %v251
        %v1059 = vpop.permute.xlu0 %1058
        %v1061 = vlaneseq
        %v1062 = vshrl.u32 %v1061, 7
        %v1063 = vsub.s32 1, %v1062
        %v1064 = vrot.slane %v1038, %v1063
        %v1065 = vlaneseq
        %v1066 = vshrl.u32 %v1065, 7
        %v1067 = vsub.s32 1, %v1066
        %v1068 = vrot.slane %v1039, %v1067
        %v1069 = vmul.f32 %v1059, %v1064
        %v1070 = vmul.f32 %v1059, %v1068
        %v1071 = vadd.f32 %v1055, %v1069
        %v1072 = vadd.f32 %v1056, %v1070
        %1073 = vset.pattern.permute.xlu0 2
        %1074 = vperm.xlu0 %1073, %v251
        %v1075 = vpop.permute.xlu0 %1074
        %v1077 = vlaneseq
        %v1078 = vshrl.u32 %v1077, 7
        %v1079 = vsub.s32 2, %v1078
        %v1080 = vrot.slane %v1038, %v1079
        %v1081 = vlaneseq
        %v1082 = vshrl.u32 %v1081, 7
        %v1083 = vsub.s32 2, %v1082
        %v1084 = vrot.slane %v1039, %v1083
        %v1085 = vmul.f32 %v1075, %v1080
        %v1086 = vmul.f32 %v1075, %v1084
        %v1087 = vadd.f32 %v1071, %v1085
        %v1088 = vadd.f32 %v1072, %v1086
        %1089 = vset.pattern.permute.xlu0 3
        %1090 = vperm.xlu0 %1089, %v251
        %v1091 = vpop.permute.xlu0 %1090
        %v1093 = vlaneseq
        %v1094 = vshrl.u32 %v1093, 7
        %v1095 = vsub.s32 3, %v1094
        %v1096 = vrot.slane %v1038, %v1095
        %v1097 = vlaneseq
        %v1098 = vshrl.u32 %v1097, 7
        %v1099 = vsub.s32 3, %v1098
        %v1100 = vrot.slane %v1039, %v1099
        %v1101 = vmul.f32 %v1091, %v1096
        %v1102 = vmul.f32 %v1091, %v1100
        %v1103 = vadd.f32 %v1087, %v1101
        %v1104 = vadd.f32 %v1088, %v1102
        %v1105 = vld [vmem:[%s4] sm:$0xf]
        %1107 = vset.pattern.permute.xlu0 0
        %1108 = vperm.xlu0 %1107, %v1105
        %v1109 = vpop.permute.xlu0 %1108
        %v1111 = vadd.f32 %v1103, %v1109
        %v1112 = vadd.f32 %v1104, %v1109
        %v1115 = vcombine.low %v1111, %v1112
        %v1117 = vadd.f32 %v241, %v1115
        %1118 = vst [vmem:[%s240] sm:$0xff] %v1117
        %s1119 = sand.u32 %s140, 1
        %s1120 = scalar_lea.sflag [#allocation4], %s1119
        %s1121 = sand.u32 %s140, 1
        %s1122 = smul.addr %s1121, 8
        %s1123 = scalar_lea.vmem [#allocation5], %s1122
        // Predicated region
        $region45: #{tpu_custom_call.1} parent=39 // pred_check
          %p1124 = pneg %p150
        $region46: #{tpu_custom_call.1} parent=39 // pred_check_branch
          %1126 = sbr.rel (%p1124) target = $region48
        $region47: #{tpu_custom_call.1} parent=39 // pred_region
          %s1128 = ssub.s32 128, 128
          %1129 = vsyncadd %s1120, %s1128
          %s1130 = smul.addr %s22, 2
          %s1131 = smul.addr %s1130, 64
          %s1132 = scalar_lea.hbm %s5, %s1131
          %s1134 = sshll.u32 %s1123, 4
          %s1135 = int_to_ptr.vmem [resolvable:$true] %s1134
          %1137 = dma.vmem_to_hbm [thread:$0]  %s1135, 128, %s1132, %s1120
        $region48: #{tpu_custom_call.1} parent=39 // pred_fallthru
          _
      $region40: #{tpu_custom_call.1} parent=5 // pred_fallthru
        _
      %p1138 = scmp.le.s32.totalorder 2, %s17
      // Predicated region
      $region49: #{tpu_custom_call.1} parent=5 // pred_check
        %p1139 = pneg %p1138
      $region50: #{tpu_custom_call.1} parent=5 // pred_check_branch
        %1141 = sbr.rel (%p1139) target = $region52
      $region51: #{tpu_custom_call.1} parent=5 // pred_region
        %s1142 = ssub.s32 %s17, 2
        // Predicated region
        $region53: #{tpu_custom_call.1} parent=51 // pred_check
          %p1143 = pneg %p156
        $region54: #{tpu_custom_call.1} parent=51 // pred_check_branch
          %1145 = sbr.rel (%p1143) target = $region56
        $region55: #{tpu_custom_call.1} parent=51 // pred_region
          %s1146 = sand.u32 %s141, 1
          %s1147 = scalar_lea.sflag [#allocation4], %s1146
          %s1148 = sand.u32 %s141, 1
          %s1149 = smul.addr %s1148, 8
          %s1150 = scalar_lea.vmem [#allocation5], %s1149
          %1151 = dma.done %s1147, 128
        $region56: #{tpu_custom_call.1} parent=51 // pred_fallthru
          _
      $region52: #{tpu_custom_call.1} parent=5 // pred_fallthru
        _
    $region6: #{tpu_custom_call.1} parent=1 // loop_footer
      %s21 = sadd.s32 1, %s17
    $region7: #{tpu_custom_call.1} parent=1 // loop_footer_branch
      %16 = sbr.rel target = $region3
    $region8: #{tpu_custom_call.1} parent=1 // loop_exit
      _
    %1152 = vsyncpa [#allocation3], 1
    %s1153 = scalar_lea.sflag [#allocation3], 1
    %1154 = vsyncpa %s1153, 1
    %1155 = vsyncpa [#allocation4], 1
    %s1156 = scalar_lea.sflag [#allocation4], 1
    %1157 = vsyncpa %s1156, 1

</llo_original>
